<compile_context>
chip_gen: v7x
topology: tpu7x:2x2x1
jax: 0.10.0
libtpu: 0.0.40
codegen_flags: <defaults>
</compile_context>

<pallas_src>
import math

import jax
import jax.numpy as jnp
from jax import lax
from jax.experimental import pallas as pl
from jax.experimental.pallas import tpu as pltpu


_VMEM_LIMIT_BYTES = 32 * 1024 * 1024   # scoped VMEM limit, safe on v5e/v6e/v7x
_TILE_VMEM_BUDGET = 8 * 1024 * 1024    # budget for the double-buffered blocks
_MAX_TILE_ROWS = 2048


def _round_up(x, m):
    return (x + m - 1) // m * m


def _row_group(num_rows, num_cols):
    """Group g rows per kernel row so the last dim is a multiple of 128 lanes."""
    if num_cols % 128 == 0:
        return 1
    g = 128 // math.gcd(num_cols, 128)
    if g > 1 and num_rows % g == 0:
        return g
    return 1


def _pick_tile_rows(num_rows, bytes_per_row):
    """Largest multiple-of-8 row tile whose double-buffered blocks fit the budget."""
    tm = _TILE_VMEM_BUDGET // (2 * max(bytes_per_row, 1))   # 2-deep pipelining
    tm = min(tm, _MAX_TILE_ROWS, _round_up(num_rows, 8))
    return max(8, (tm // 8) * 8)


# ----------------------------- kernels --------------------------------------


def _bn_prelu_kernel(x_ref, scale_ref, shift_ref, alpha_ref, o_ref):
    # x_ref/o_ref: (TM, CL); scale/shift: (1, CL) resident; alpha: (1, 1) resident.
    y = x_ref[...] * scale_ref[...] + shift_ref[...]
    o_ref[...] = jnp.where(y >= 0.0, y, alpha_ref[...] * y)


def _patch_matmul_kernel(p_ref, w_ref, b_ref, o_ref):
    # p_ref: (TM, 8*Cin); w_ref: (8*Cin, Cout) resident; b_ref: (1, Cout) resident.
    o_ref[...] = (
        jnp.dot(
            p_ref[...],
            w_ref[...],
            preferred_element_type=jnp.float32,
            precision=lax.Precision.HIGHEST,
        )
        + b_ref[...]
    )


# ----------------------------- forward --------------------------------------


def transition_layer_forward(x, params):
    """x: (N, Cin, D, H, W) f32 -> (N, Cout, (D+2)//2, (H+2)//2, (W+2)//2) f32."""
    N, Cin, D, H, W = x.shape
    w1, b1 = params["w1"], params["b1"]          # (Cout, Cin, 1,1,1), (Cout,)
    w2, b2 = params["w2"], params["b2"]          # (Cout, Cout, 2,2,2), (Cout,)
    gamma, beta = params["gamma"], params["beta"]
    rmean, rvar = params["running_mean"], params["running_var"]
    eps, alpha = params["eps"], params["alpha"]
    Cout = w1.shape[0]
    Do, Ho, Wo = (D + 2) // 2, (H + 2) // 2, (W + 2) // 2

    # Fold BatchNorm3d (inference) into a per-channel affine.
    scale = gamma * lax.rsqrt(rvar + eps)                 # (Cin,)
    shift = beta - rmean * scale                          # (Cin,)

    # Compose conv1 (1x1x1, pad=1) with conv2 (2x2x2, s=2):
    #   conv2(conv1(y)) = sum_t y_pad[tap t] @ (W1 @ W2[t]) + (b2 + sum_t b1 @ W2[t])
    # (elementwise contraction so the fused weights stay exact in f32).
    w1m = w1.reshape(Cout, Cin).T                                     # (Cin, Cmid)
    w2m = jnp.transpose(w2, (2, 3, 4, 1, 0)).reshape(8, Cout, Cout)   # (tap, Cmid, Cout)
    wf = jnp.sum(w1m[None, :, :, None] * w2m[:, None, :, :], axis=2)  # (8, Cin, Cout)
    wbig = wf.reshape(8 * Cin, Cout)
    b_fused = b2 + jnp.sum(b1[None, :, None] * w2m, axis=(0, 1))      # (Cout,)

    # ---- stage 1: BN + PReLU (gridded elementwise kernel) -------------------
    # TODO(synk): keep activations NDHWC end-to-end across layers; this
    # transpose (and the final one) is per-op glue outside the kernels.
    xc = jnp.transpose(x, (0, 2, 3, 4, 1)).reshape(N * D * H * W, Cin)
    M = N * D * H * W
    g = _row_group(M, Cin)                 # lane-dense grouping when divisible
    Mg, CL = M // g, g * Cin
    xg = xc.reshape(Mg, CL)
    scale_g = jnp.tile(scale.reshape(1, Cin), (1, g))
    shift_g = jnp.tile(shift.reshape(1, Cin), (1, g))
    alpha2 = alpha.reshape(1, 1)

    tm1 = _pick_tile_rows(Mg, 2 * CL * 4)
    y = pl.pallas_call(
        _bn_prelu_kernel,
        out_shape=jax.ShapeDtypeStruct((Mg, CL), jnp.float32),
        grid=(pl.cdiv(Mg, tm1),),
        in_specs=[
            pl.BlockSpec((tm1, CL), lambda i: (i, 0)),
            pl.BlockSpec((1, CL), lambda i: (0, 0)),    # resident scale
            pl.BlockSpec((1, CL), lambda i: (0, 0)),    # resident shift
            pl.BlockSpec((1, 1), lambda i: (0, 0)),     # resident PReLU slope
        ],
        out_specs=pl.BlockSpec((tm1, CL), lambda i: (i, 0)),
        compiler_params=pltpu.CompilerParams(
            dimension_semantics=("parallel",),
            vmem_limit_bytes=_VMEM_LIMIT_BYTES),
        cost_estimate=pl.CostEstimate(
            flops=4 * Mg * CL, transcendentals=0,
            bytes_accessed=4 * (2 * Mg * CL + 2 * CL + 1)),
    )(xg, scale_g, shift_g, alpha2)

    # ---- dropout: identity in inference mode --------------------------------
    # TODO(synk): training-mode nn.Dropout (random Bernoulli mask) not reproduced.

    # ---- stage 2: fused conv1+conv2 as one patch matmul ----------------------
    # conv1's zero padding of its (PReLU'd) input == zero-padding y; both conv
    # biases live in b_fused, so padded taps contribute exactly 0.  The stride-2
    # 2x2x2 window partitions the padded volume, so the im2col is a pure
    # reshape/transpose (no duplication) done as XLA glue between the kernels.
    y5 = y.reshape(N, D, H, W, Cin)
    y_pad = jnp.pad(
        y5,
        ((0, 0), (1, 2 * Do - D - 1), (1, 2 * Ho - H - 1), (1, 2 * Wo - W - 1), (0, 0)),
    )
    p = y_pad.reshape(N, Do, 2, Ho, 2, Wo, 2, Cin)
    p = jnp.transpose(p, (0, 1, 3, 5, 2, 4, 6, 7))        # (N,Do,Ho,Wo,kd,kh,kw,C)
    M2 = N * Do * Ho * Wo
    p = p.reshape(M2, 8 * Cin)

    tm2 = _pick_tile_rows(M2, (8 * Cin + Cout) * 4)
    out = pl.pallas_call(
        _patch_matmul_kernel,
        out_shape=jax.ShapeDtypeStruct((M2, Cout), jnp.float32),
        grid=(pl.cdiv(M2, tm2),),
        in_specs=[
            pl.BlockSpec((tm2, 8 * Cin), lambda i: (i, 0)),
            pl.BlockSpec((8 * Cin, Cout), lambda i: (0, 0)),  # resident fused weights
            pl.BlockSpec((1, Cout), lambda i: (0, 0)),        # resident fused bias
        ],
        out_specs=pl.BlockSpec((tm2, Cout), lambda i: (i, 0)),
        compiler_params=pltpu.CompilerParams(
            dimension_semantics=("parallel",),
            vmem_limit_bytes=_VMEM_LIMIT_BYTES),
        cost_estimate=pl.CostEstimate(
            flops=2 * M2 * 8 * Cin * Cout + M2 * Cout, transcendentals=0,
            bytes_accessed=4 * (M2 * 8 * Cin + 8 * Cin * Cout + M2 * Cout + Cout)),
    )(p, wbig, b_fused.reshape(1, Cout))

    out = out.reshape(N, Do, Ho, Wo, Cout)
    return jnp.transpose(out, (0, 4, 1, 2, 3))            # back to NCDHW


# ----------------------------- reference ------------------------------------


def reference_forward(x, params):
    """Pure-JAX reference of the PyTorch forward (inference mode)."""
    gamma, beta = params["gamma"], params["beta"]
    rmean, rvar = params["running_mean"], params["running_var"]
    eps, alpha = params["eps"], params["alpha"]
    inv_std = lax.rsqrt(rvar + eps)
    scale = (gamma * inv_std)[None, :, None, None, None]
    shift = (beta - rmean * gamma * inv_std)[None, :, None, None, None]
    y = x * scale + shift
    y = jnp.where(y >= 0, y, alpha[0] * y)
    dn = ("NCDHW", "OIDHW", "NCDHW")
    y = lax.conv_general_dilated(
        y, params["w1"], window_strides=(1, 1, 1),
        padding=[(1, 1), (1, 1), (1, 1)], dimension_numbers=dn,
        precision=lax.Precision.HIGHEST,
    ) + params["b1"][None, :, None, None, None]
    y = lax.conv_general_dilated(
        y, params["w2"], window_strides=(2, 2, 2),
        padding="VALID", dimension_numbers=dn,
        precision=lax.Precision.HIGHEST,
    ) + params["b2"][None, :, None, None, None]
    return y


if __name__ == "__main__":
    N, Cin, Cout, D, H, W = 2, 4, 8, 8, 8, 8
    key = jax.random.PRNGKey(0)
    ks = jax.random.split(key, 9)

    params = {
        "w1": 0.1 * jax.random.normal(ks[0], (Cout, Cin, 1, 1, 1), jnp.float32),
        "b1": 0.05 * jax.random.normal(ks[1], (Cout,), jnp.float32),
        "w2": 0.1 * jax.random.normal(ks[2], (Cout, Cout, 2, 2, 2), jnp.float32),
        "b2": 0.05 * jax.random.normal(ks[3], (Cout,), jnp.float32),
        "gamma": 1.0 + 0.1 * jax.random.normal(ks[4], (Cin,), jnp.float32),
        "beta": 0.1 * jax.random.normal(ks[5], (Cin,), jnp.float32),
        "running_mean": 0.1 * jax.random.normal(ks[6], (Cin,), jnp.float32),
        "running_var": 1.0 + 0.1 * jnp.abs(jax.random.normal(ks[7], (Cin,), jnp.float32)),
        "eps": jnp.float32(1e-5),
        "alpha": jnp.full((1,), 0.25, jnp.float32),       # PReLU init=0.25
    }

    x = jax.random.normal(ks[8], (N, Cin, D, H, W), jnp.float32)

    fwd = jax.jit(transition_layer_forward)
    out = jax.block_until_ready(fwd(x, params))
    ref = jax.block_until_ready(reference_forward(x, params))

    assert out.shape == (N, Cout, (D + 2) // 2, (H + 2) // 2, (W + 2) // 2), out.shape
    err = float(jnp.max(jnp.abs(out - ref)))
    assert jnp.allclose(out, ref, atol=1e-3, rtol=1e-3), err
    print("KERNEL_OK")
</pallas_src>

<mosaic_0001>
module attributes {stable_mosaic.version = 11 : i64} {
  func.func @_bn_prelu_kernel(%arg0: i32, %arg1: memref<32x128xf32, #tpu.memory_space<vmem>>, %arg2: memref<1x128xf32, #tpu.memory_space<vmem>>, %arg3: memref<1x128xf32, #tpu.memory_space<vmem>>, %arg4: memref<1x1xf32, #tpu.memory_space<vmem>>, %arg5: memref<32x128xf32, #tpu.memory_space<vmem>>) attributes {dimension_semantics = [#tpu.dimension_semantics<parallel>], iteration_bounds = array<i64: 1>, scalar_prefetch = 0 : i64, scratch_operands = 0 : i64, tpu.core_type = #tpu.core_type<tc>, window_params = [{transform_indices = @transform_0, window_bounds = array<i64: 32, 128>}, {pipeline_mode = #tpu.pipeline_mode<synchronous>, transform_indices = @transform_1, window_bounds = array<i64: 1, 128>}, {pipeline_mode = #tpu.pipeline_mode<synchronous>, transform_indices = @transform_2, window_bounds = array<i64: 1, 128>}, {pipeline_mode = #tpu.pipeline_mode<synchronous>, transform_indices = @transform_3, window_bounds = array<i64: 1, 1>}, {transform_indices = @transform_4, window_bounds = array<i64: 32, 128>}]} {
    %c0 = arith.constant 0 : index
    %c0_0 = arith.constant 0 : index
    %0 = vector.load %arg1[%c0, %c0_0] : memref<32x128xf32, #tpu.memory_space<vmem>>, vector<32x128xf32>
    %c0_1 = arith.constant 0 : index
    %c0_2 = arith.constant 0 : index
    %1 = vector.load %arg2[%c0_1, %c0_2] : memref<1x128xf32, #tpu.memory_space<vmem>>, vector<1x128xf32>
    %2 = vector.broadcast %1 : vector<1x128xf32> to vector<32x128xf32>
    %3 = arith.mulf %0, %2 : vector<32x128xf32>
    %c0_3 = arith.constant 0 : index
    %c0_4 = arith.constant 0 : index
    %4 = vector.load %arg3[%c0_3, %c0_4] : memref<1x128xf32, #tpu.memory_space<vmem>>, vector<1x128xf32>
    %5 = vector.broadcast %4 : vector<1x128xf32> to vector<32x128xf32>
    %6 = arith.addf %3, %5 : vector<32x128xf32>
    %cst = arith.constant 0.000000e+00 : f32
    %7 = vector.broadcast %cst : f32 to vector<32x128xf32>
    %8 = arith.cmpf oge, %6, %7 : vector<32x128xf32>
    %c0_5 = arith.constant 0 : index
    %c0_6 = arith.constant 0 : index
    %9 = vector.load %arg4[%c0_5, %c0_6] : memref<1x1xf32, #tpu.memory_space<vmem>>, vector<1x1xf32>
    %10 = vector.broadcast %9 : vector<1x1xf32> to vector<32x128xf32>
    %11 = arith.mulf %10, %6 : vector<32x128xf32>
    %12 = arith.select %8, %6, %11 : vector<32x128xi1>, vector<32x128xf32>
    %c0_7 = arith.constant 0 : index
    %c0_8 = arith.constant 0 : index
    %13 = vector.load %arg5[%c0_7, %c0_8] : memref<32x128xf32, #tpu.memory_space<vmem>>, vector<32x128xf32>
    tpu.vector_store %arg5[%c0_7, %c0_8], %12 {strides = array<i32>} : memref<32x128xf32, #tpu.memory_space<vmem>>, vector<32x128xf32>,
    return
  }
  func.func @transform_0(%arg0: i32) -> (i32, i32) {
    %c0_i32 = arith.constant 0 : i32
    %c0_i32_0 = arith.constant 0 : i32
    return %arg0, %c0_i32 : i32, i32
  }
  func.func @transform_1(%arg0: i32) -> (i32, i32) {
    %c0_i32 = arith.constant 0 : i32
    %c0_i32_0 = arith.constant 0 : i32
    %c0_i32_1 = arith.constant 0 : i32
    return %c0_i32, %c0_i32_0 : i32, i32
  }
  func.func @transform_2(%arg0: i32) -> (i32, i32) {
    %c0_i32 = arith.constant 0 : i32
    %c0_i32_0 = arith.constant 0 : i32
    %c0_i32_1 = arith.constant 0 : i32
    return %c0_i32, %c0_i32_0 : i32, i32
  }
  func.func @transform_3(%arg0: i32) -> (i32, i32) {
    %c0_i32 = arith.constant 0 : i32
    %c0_i32_0 = arith.constant 0 : i32
    %c0_i32_1 = arith.constant 0 : i32
    return %c0_i32, %c0_i32_0 : i32, i32
  }
  func.func @transform_4(%arg0: i32) -> (i32, i32) {
    %c0_i32 = arith.constant 0 : i32
    %c0_i32_0 = arith.constant 0 : i32
    return %arg0, %c0_i32 : i32, i32
  }
}

module attributes {stable_mosaic.version = 11 : i64} {
  func.func @_patch_matmul_kernel(%arg0: i32, %arg1: memref<256x32xf32, #tpu.memory_space<vmem>>, %arg2: memref<32x8xf32, #tpu.memory_space<vmem>>, %arg3: memref<1x8xf32, #tpu.memory_space<vmem>>, %arg4: memref<256x8xf32, #tpu.memory_space<vmem>>) attributes {dimension_semantics = [#tpu.dimension_semantics<parallel>], iteration_bounds = array<i64: 1>, scalar_prefetch = 0 : i64, scratch_operands = 0 : i64, tpu.core_type = #tpu.core_type<tc>, window_params = [{transform_indices = @transform_0, window_bounds = array<i64: 256, 32>}, {pipeline_mode = #tpu.pipeline_mode<synchronous>, transform_indices = @transform_1, window_bounds = array<i64: 32, 8>}, {pipeline_mode = #tpu.pipeline_mode<synchronous>, transform_indices = @transform_2, window_bounds = array<i64: 1, 8>}, {transform_indices = @transform_3, window_bounds = array<i64: 256, 8>}]} {
    %c0 = arith.constant 0 : index
    %c0_0 = arith.constant 0 : index
    %0 = vector.load %arg1[%c0, %c0_0] : memref<256x32xf32, #tpu.memory_space<vmem>>, vector<256x32xf32>
    %c0_1 = arith.constant 0 : index
    %c0_2 = arith.constant 0 : index
    %1 = vector.load %arg2[%c0_1, %c0_2] : memref<32x8xf32, #tpu.memory_space<vmem>>, vector<32x8xf32>
    %cst = arith.constant dense<0.000000e+00> : vector<256x8xf32>
    %2 = tpu.matmul %0, %1, %cst {dimension_numbers = #tpu.dot_dimension_numbers<[1], [0], [0], [1], [0, 0, 1, 1], [], []>, precision = #tpu.contract_precision<fp32>} : vector<256x32xf32>, vector<32x8xf32>, vector<256x8xf32> -> vector<256x8xf32>
    %c0_3 = arith.constant 0 : index
    %c0_4 = arith.constant 0 : index
    %3 = vector.load %arg3[%c0_3, %c0_4] : memref<1x8xf32, #tpu.memory_space<vmem>>, vector<1x8xf32>
    %4 = vector.broadcast %3 : vector<1x8xf32> to vector<256x8xf32>
    %5 = arith.addf %2, %4 : vector<256x8xf32>
    %c0_5 = arith.constant 0 : index
    %c0_6 = arith.constant 0 : index
    %6 = vector.load %arg4[%c0_5, %c0_6] : memref<256x8xf32, #tpu.memory_space<vmem>>, vector<256x8xf32>
    tpu.vector_store %arg4[%c0_5, %c0_6], %5 {strides = array<i32>} : memref<256x8xf32, #tpu.memory_space<vmem>>, vector<256x8xf32>,
    return
  }
  func.func @transform_0(%arg0: i32) -> (i32, i32) {
    %c0_i32 = arith.constant 0 : i32
    %c0_i32_0 = arith.constant 0 : i32
    return %arg0, %c0_i32 : i32, i32
  }
  func.func @transform_1(%arg0: i32) -> (i32, i32) {
    %c0_i32 = arith.constant 0 : i32
    %c0_i32_0 = arith.constant 0 : i32
    %c0_i32_1 = arith.constant 0 : i32
    return %c0_i32, %c0_i32_0 : i32, i32
  }
  func.func @transform_2(%arg0: i32) -> (i32, i32) {
    %c0_i32 = arith.constant 0 : i32
    %c0_i32_0 = arith.constant 0 : i32
    %c0_i32_1 = arith.constant 0 : i32
    return %c0_i32, %c0_i32_0 : i32, i32
  }
  func.func @transform_3(%arg0: i32) -> (i32, i32) {
    %c0_i32 = arith.constant 0 : i32
    %c0_i32_0 = arith.constant 0 : i32
    return %arg0, %c0_i32 : i32, i32
  }
}

</mosaic_0001>

<llo_original>
// kernel: transition_layer_forward.2
$region0: #{transition_layer_forward.2}
  #allocation0 [shape = 'u32[]', space=smem, size = 0x4, offset = 0x4, fixed_abs, tag = 'smem constant byte address 0x4 - core index']
  #allocation1 [shape = 'u32[144,128]{1,0:T(1,128)}', space=vmem, size = 0x12000, scoped, tag = 'internal scratch']
  #allocation2 [shape = 'f32[1,1]{1,0:T(1,128)S(1)}', space=vmem, size = 0x200, scoped, tag = 'scoped memory for transition_layer_forward.2']
  %s0 = inlined_call_operand.vmem [shape: f32[32,128], index: 0, kind: input, shape index: {}]
  %s1 = inlined_call_operand.vmem [shape: f32[1,128], index: 1, kind: input, shape index: {}]
  %s2 = inlined_call_operand.vmem [shape: f32[1,128], index: 2, kind: input, shape index: {}]
  %s3 = inlined_call_operand.<no memory space> [shape: f32[1,1], index: 3, kind: input, shape index: {}]
  %s4 = inlined_call_operand.vmem [shape: f32[32,128], index: 4, kind: output, shape index: {}]
  %s5 = sld [smem:[#allocation0]]
  $region26: #{transition_layer_forward.2} parent=0
    _
  %s7 = ssub.s32 1, %s5
  %s8 = scalar_select 0, %s7, %s5
  %v9 = vstv %s3
  %10 = vst [vmem:[#allocation2] sm:$0x1] %v9
  // Predicated region
  $region2: #{transition_layer_forward.2} parent=0 // pred_check
    _
  $region3: #{transition_layer_forward.2} parent=0 // pred_check_branch
    %12 = sbr.rel (0) target = $region5
  $region4: #{transition_layer_forward.2} parent=0 // pred_region
    _
  $region5: #{transition_layer_forward.2} parent=0 // pred_fallthru
    _
  // Predicated region
  $region6: #{transition_layer_forward.2} parent=0 // pred_check
    _
  $region7: #{transition_layer_forward.2} parent=0 // pred_check_branch
    %14 = sbr.rel (0) target = $region9
  $region8: #{transition_layer_forward.2} parent=0 // pred_region
    _
  $region9: #{transition_layer_forward.2} parent=0 // pred_fallthru
    _
  // Predicated region
  $region10: #{transition_layer_forward.2} parent=0 // pred_check
    _
  $region11: #{transition_layer_forward.2} parent=0 // pred_check_branch
    %16 = sbr.rel (0) target = $region13
  $region12: #{transition_layer_forward.2} parent=0 // pred_region
    _
  $region13: #{transition_layer_forward.2} parent=0 // pred_fallthru
    _
  // Predicated region
  $region14: #{transition_layer_forward.2} parent=0 // pred_check
    _
  $region15: #{transition_layer_forward.2} parent=0 // pred_check_branch
    %18 = sbr.rel (0) target = $region17
  $region16: #{transition_layer_forward.2} parent=0 // pred_region
    _
  $region17: #{transition_layer_forward.2} parent=0 // pred_fallthru
    _
  %v19 = vld [vmem:[%s0] sm:$0xff]
  %v20 = vld [vmem:[%s0 + $0x8] sm:$0xff]
  %v21 = vld [vmem:[%s0 + $0x10] sm:$0xff]
  %v22 = vld [vmem:[%s0 + $0x18] sm:$0xff]
  %v23 = vld [vmem:[%s1] sm:$0x1]
  %v25 = vlaneseq
  %v26 = vshrl.u32 %v25, 7
  %v27 = vsub.s32 0, %v26
  %v28 = vrot.slane %v23, %v27
  %v30 = vmul.f32 %v19, %v28
  %v31 = vmul.f32 %v20, %v28
  %v32 = vmul.f32 %v21, %v28
  %v33 = vmul.f32 %v22, %v28
  %v34 = vld [vmem:[%s2] sm:$0x1]
  %v36 = vlaneseq
  %v37 = vshrl.u32 %v36, 7
  %v38 = vsub.s32 0, %v37
  %v39 = vrot.slane %v34, %v38
  %v41 = vadd.f32 %v30, %v39
  %v42 = vadd.f32 %v31, %v39
  %v43 = vadd.f32 %v32, %v39
  %v44 = vadd.f32 %v33, %v39
  %vm45 = vcmp.ge.f32.partialorder %v41, 0.0
  %vm46 = vcmp.ge.f32.partialorder %v42, 0.0
  %vm47 = vcmp.ge.f32.partialorder %v43, 0.0
  %vm48 = vcmp.ge.f32.partialorder %v44, 0.0
  %v49 = vld [vmem:[#allocation2] sm:$0x1]
  %v51 = vlaneseq
  %v52 = vshrl.u32 %v51, 7
  %v53 = vsub.s32 0, %v52
  %v54 = vrot.slane %v49, %v53
  %55 = vset.pattern.permute.xlu0 0
  %56 = vperm.xlu0 %55, %v54
  %v57 = vpop.permute.xlu0 %56
  %v59 = vmul.f32 %v57, %v41
  %v60 = vmul.f32 %v57, %v42
  %v61 = vmul.f32 %v57, %v43
  %v62 = vmul.f32 %v57, %v44
  %v63 = vsel %vm45, %v41, %v59
  %v64 = vsel %vm46, %v42, %v60
  %v65 = vsel %vm47, %v43, %v61
  %v66 = vsel %vm48, %v44, %v62
  %67 = vst [vmem:[%s4] sm:$0xff] %v63
  %68 = vst [vmem:[%s4 + $0x8] sm:$0xff] %v64
  %69 = vst [vmem:[%s4 + $0x10] sm:$0xff] %v65
  %70 = vst [vmem:[%s4 + $0x18] sm:$0xff] %v66
  // Predicated region
  $region18: #{transition_layer_forward.2} parent=0 // pred_check
    _
  $region19: #{transition_layer_forward.2} parent=0 // pred_check_branch
    %72 = sbr.rel (0) target = $region21
  $region20: #{transition_layer_forward.2} parent=0 // pred_region
    _
  $region21: #{transition_layer_forward.2} parent=0 // pred_fallthru
    _
  // Predicated region
  $region22: #{transition_layer_forward.2} parent=0 // pred_check
    _
  $region23: #{transition_layer_forward.2} parent=0 // pred_check_branch
    %74 = sbr.rel (0) target = $region25
  $region24: #{transition_layer_forward.2} parent=0 // pred_region
    _
  $region25: #{transition_layer_forward.2} parent=0 // pred_fallthru
    _

// kernel: transition_layer_forward.3
$region0: #{transition_layer_forward.3}
  #allocation0 [shape = 'u32[]', space=smem, size = 0x4, offset = 0x4, fixed_abs, tag = 'smem constant byte address 0x4 - core index']
  #allocation1 [shape = 'u32[144,128]{1,0:T(1,128)}', space=vmem, size = 0x12000, scoped, tag = 'internal scratch']
  %s0 = inlined_call_operand.vmem [shape: f32[250,32], index: 0, kind: input, shape index: {}]
  %s1 = inlined_call_operand.vmem [shape: f32[32,8], index: 1, kind: input, shape index: {}]
  %s2 = inlined_call_operand.vmem [shape: f32[1,8], index: 2, kind: input, shape index: {}]
  %s3 = inlined_call_operand.vmem [shape: f32[250,8], index: 3, kind: output, shape index: {}]
  %s4 = sld [smem:[#allocation0]]
  $region22: #{transition_layer_forward.3} parent=0
    _
  %s6 = ssub.s32 1, %s4
  %s7 = scalar_select 0, %s6, %s4
  // Predicated region
  $region2: #{transition_layer_forward.3} parent=0 // pred_check
    _
  $region3: #{transition_layer_forward.3} parent=0 // pred_check_branch
    %9 = sbr.rel (0) target = $region5
  $region4: #{transition_layer_forward.3} parent=0 // pred_region
    _
  $region5: #{transition_layer_forward.3} parent=0 // pred_fallthru
    _
  // Predicated region
  $region6: #{transition_layer_forward.3} parent=0 // pred_check
    _
  $region7: #{transition_layer_forward.3} parent=0 // pred_check_branch
    %11 = sbr.rel (0) target = $region9
  $region8: #{transition_layer_forward.3} parent=0 // pred_region
    _
  $region9: #{transition_layer_forward.3} parent=0 // pred_fallthru
    _
  // Predicated region
  $region10: #{transition_layer_forward.3} parent=0 // pred_check
    _
  $region11: #{transition_layer_forward.3} parent=0 // pred_check_branch
    %13 = sbr.rel (0) target = $region13
  $region12: #{transition_layer_forward.3} parent=0 // pred_region
    _
  $region13: #{transition_layer_forward.3} parent=0 // pred_fallthru
    _
  %v14 = vld [vmem:[%s0] sm:$0xff]
  %v15 = vld [vmem:[%s0 + $0x8] sm:$0xff]
  %v16 = vld [vmem:[%s0 + $0x10] sm:$0xff]
  %v17 = vld [vmem:[%s0 + $0x18] sm:$0xff]
  %v18 = vld [vmem:[%s0 + $0x20] sm:$0xff]
  %v19 = vld [vmem:[%s0 + $0x28] sm:$0xff]
  %v20 = vld [vmem:[%s0 + $0x30] sm:$0xff]
  %v21 = vld [vmem:[%s0 + $0x38] sm:$0xff]
  %v22 = vld [vmem:[%s0 + $0x40] sm:$0xff]
  %v23 = vld [vmem:[%s0 + $0x48] sm:$0xff]
  %v24 = vld [vmem:[%s0 + $0x50] sm:$0xff]
  %v25 = vld [vmem:[%s0 + $0x58] sm:$0xff]
  %v26 = vld [vmem:[%s0 + $0x60] sm:$0xff]
  %v27 = vld [vmem:[%s0 + $0x68] sm:$0xff]
  %v28 = vld [vmem:[%s0 + $0x70] sm:$0xff]
  %v29 = vld [vmem:[%s0 + $0x78] sm:$0xff]
  %v30 = vld [vmem:[%s0 + $0x80] sm:$0xff]
  %v31 = vld [vmem:[%s0 + $0x88] sm:$0xff]
  %v32 = vld [vmem:[%s0 + $0x90] sm:$0xff]
  %v33 = vld [vmem:[%s0 + $0x98] sm:$0xff]
  %v34 = vld [vmem:[%s0 + $0xa0] sm:$0xff]
  %v35 = vld [vmem:[%s0 + $0xa8] sm:$0xff]
  %v36 = vld [vmem:[%s0 + $0xb0] sm:$0xff]
  %v37 = vld [vmem:[%s0 + $0xb8] sm:$0xff]
  %v38 = vld [vmem:[%s0 + $0xc0] sm:$0xff]
  %v39 = vld [vmem:[%s0 + $0xc8] sm:$0xff]
  %v40 = vld [vmem:[%s0 + $0xd0] sm:$0xff]
  %v41 = vld [vmem:[%s0 + $0xd8] sm:$0xff]
  %v42 = vld [vmem:[%s0 + $0xe0] sm:$0xff]
  %v43 = vld [vmem:[%s0 + $0xe8] sm:$0xff]
  %v44 = vld [vmem:[%s0 + $0xf0] sm:$0xff]
  %v45 = vld [vmem:[%s0 + $0xf8] sm:$0xff]
  %v46 = vld [vmem:[%s1] sm:$0xff]
  %v47 = vld [vmem:[%s1 + $0x8] sm:$0xff]
  %v48 = vld [vmem:[%s1 + $0x10] sm:$0xff]
  %v49 = vld [vmem:[%s1 + $0x18] sm:$0xff]
  %v50 = vld [vmem:[%s2] sm:$0x1]
  %v52 = vlaneseq
  %v53 = vshrl.u32 %v52, 7
  %v54 = vsub.s32 0, %v53
  %v55 = vrot.slane %v50, %v54
  %vm57 = vcmask 261120
  %v59 = vsel %vm57, %v14, 0
  %v62 = vsel %vm57, %v15, 0
  %v65 = vsel %vm57, %v16, 0
  %v68 = vsel %vm57, %v17, 0
  %v71 = vsel %vm57, %v18, 0
  %v74 = vsel %vm57, %v19, 0
  %v77 = vsel %vm57, %v20, 0
  %v80 = vsel %vm57, %v21, 0
  %v83 = vsel %vm57, %v22, 0
  %v86 = vsel %vm57, %v23, 0
  %v89 = vsel %vm57, %v24, 0
  %v92 = vsel %vm57, %v25, 0
  %v95 = vsel %vm57, %v26, 0
  %v98 = vsel %vm57, %v27, 0
  %v101 = vsel %vm57, %v28, 0
  %v104 = vsel %vm57, %v29, 0
  %v107 = vsel %vm57, %v30, 0
  %v110 = vsel %vm57, %v31, 0
  %v113 = vsel %vm57, %v32, 0
  %v116 = vsel %vm57, %v33, 0
  %v119 = vsel %vm57, %v34, 0
  %v122 = vsel %vm57, %v35, 0
  %v125 = vsel %vm57, %v36, 0
  %v128 = vsel %vm57, %v37, 0
  %v131 = vsel %vm57, %v38, 0
  %v134 = vsel %vm57, %v39, 0
  %v137 = vsel %vm57, %v40, 0
  %v140 = vsel %vm57, %v41, 0
  %v143 = vsel %vm57, %v42, 0
  %v146 = vsel %vm57, %v43, 0
  %v149 = vsel %vm57, %v44, 0
  %v152 = vsel %vm57, %v45, 0
  %154 = vmatprep.subr.mxu0 0.0
  %v155 = vand.u32 %v46, 4294901760
  %156 = vmatpush1.msra.mxu0 %v155
  %157 = vmatprep.subr.mxu0 0.0
  %v158 = vand.u32 %v47, 4294901760
  %159 = vmatpush1.msra.mxu0 %v158
  %160 = vmatprep.subr.mxu0 0.0
  %v161 = vand.u32 %v48, 4294901760
  %162 = vmatpush1.msra.mxu0 %v161
  %163 = vmatprep.subr.mxu0 0.0
  %v164 = vand.u32 %v49, 4294901760
  %165 = vmatpush1.msra.mxu0 %v164
  %166 = vmatprep.subr.mxu0 0.0
  %167 = vmatpush1.msra.mxu0 0.0
  %168 = vmatprep.subr.mxu0 0.0
  %169 = vmatpush1.msra.mxu0 0.0
  %170 = vmatprep.subr.mxu0 0.0
  %171 = vmatpush1.msra.mxu0 0.0
  %172 = vmatprep.subr.mxu0 0.0
  %173 = vmatpush1.msra.mxu0 0.0
  %174 = vmatprep.subr.mxu0 0.0
  %175 = vmatpush1.msra.mxu0 0.0
  %176 = vmatprep.subr.mxu0 0.0
  %177 = vmatpush1.msra.mxu0 0.0
  %178 = vmatprep.subr.mxu0 0.0
  %179 = vmatpush1.msra.mxu0 0.0
  %180 = vmatprep.subr.mxu0 0.0
  %181 = vmatpush1.msra.mxu0 0.0
  %182 = vmatprep.subr.mxu0 0.0
  %183 = vmatpush1.msra.mxu0 0.0
  %184 = vmatprep.subr.mxu0 0.0
  %185 = vmatpush1.msra.mxu0 0.0
  %186 = vmatprep.subr.mxu0 0.0
  %187 = vmatpush1.msra.mxu0 0.0
  %188 = vmatprep.subr.mxu0 0.0
  %189 = vmatpush1.msra.mxu0 0.0
  %190 = vmatprep.subr.mxu0 0.0
  %191 = vmatpush1.msra.mxu0 0.0
  %192 = vmatprep.subr.mxu0 0.0
  %193 = vmatpush1.msra.mxu0 0.0
  %194 = vmatprep.subr.mxu0 0.0
  %195 = vmatpush1.msra.mxu0 0.0
  %196 = vmatprep.subr.mxu0 0.0
  %197 = vmatpush1.msra.mxu0 0.0
  %198 = vmatprep.subr.mxu0 0.0
  %199 = vmatpush1.msra.mxu0 0.0
  %200 = vmatprep.subr.mxu0 0.0
  %201 = vmatpush1.msra.mxu0 0.0
  %202 = vmatprep.subr.mxu0 0.0
  %203 = vmatpush1.msra.mxu0 0.0
  %204 = vmatprep.subr.mxu0 0.0
  %205 = vmatpush1.msra.mxu0 0.0
  %206 = vmatprep.subr.mxu0 0.0
  %207 = vmatpush1.msra.mxu0 0.0
  %208 = vmatprep.subr.mxu0 0.0
  %209 = vmatpush1.msra.mxu0 0.0
  %210 = vmatprep.subr.mxu0 0.0
  %211 = vmatpush1.msra.mxu0 0.0
  %212 = vmatprep.subr.mxu0 0.0
  %213 = vmatpush1.msra.mxu0 0.0
  %214 = vmatprep.subr.mxu0 0.0
  %215 = vmatpush1.msra.mxu0 0.0
  %216 = vmatprep.subr.mxu0 0.0
  %217 = vmatpush1.msra.mxu0 0.0
  %218 = vmatprep.subr.mxu0 0.0
  %219 = vmatpush1.msra.mxu0 0.0
  %220 = vmatprep.subr.mxu0 0.0
  %221 = vmatpush1.msra.mxu0 0.0
  %222 = vmatprep.mubr.f32.mxu0 0.0
  %v223 = vand.u32 %v59, 4294901760
  %v224 = vsub.f32 %v59, %v223
  %v225 = vand.u32 %v224, 4294901760
  %v226 = vsub.f32 %v224, %v225
  %v227 = vand.u32 %v226, 4294901760
  %228 = vmatmul.mubr.f32.gmra.mrb[0].mxu0 %v227
  %v229 = vpop.f32.mrb[0].mxu0
  %v230 = vadd.f32 %v55, %v229
  %v231 = vpop.f32.mrb[0].mxu0
  %232 = vmatprep.mubr.f32.mxu0 0.0
  %v233 = vand.u32 %v62, 4294901760
  %v234 = vsub.f32 %v62, %v233
  %v235 = vand.u32 %v234, 4294901760
  %v236 = vsub.f32 %v234, %v235
  %v237 = vand.u32 %v236, 4294901760
  %238 = vmatmul.mubr.f32.gmra.mrb[0].mxu0 %v237
  %v239 = vpop.f32.mrb[0].mxu0
  %v240 = vadd.f32 %v55, %v239
  %v241 = vpop.f32.mrb[0].mxu0
  %242 = vmatprep.mubr.f32.mxu0 0.0
  %v243 = vand.u32 %v65, 4294901760
  %v244 = vsub.f32 %v65, %v243
  %v245 = vand.u32 %v244, 4294901760
  %v246 = vsub.f32 %v244, %v245
  %v247 = vand.u32 %v246, 4294901760
  %248 = vmatmul.mubr.f32.gmra.mrb[0].mxu0 %v247
  %v249 = vpop.f32.mrb[0].mxu0
  %v250 = vadd.f32 %v55, %v249
  %v251 = vpop.f32.mrb[0].mxu0
  %252 = vmatprep.mubr.f32.mxu0 0.0
  %v253 = vand.u32 %v68, 4294901760
  %v254 = vsub.f32 %v68, %v253
  %v255 = vand.u32 %v254, 4294901760
  %v256 = vsub.f32 %v254, %v255
  %v257 = vand.u32 %v256, 4294901760
  %258 = vmatmul.mubr.f32.gmra.mrb[0].mxu0 %v257
  %v259 = vpop.f32.mrb[0].mxu0
  %v260 = vadd.f32 %v55, %v259
  %v261 = vpop.f32.mrb[0].mxu0
  %262 = vmatprep.mubr.f32.mxu0 0.0
  %v263 = vand.u32 %v71, 4294901760
  %v264 = vsub.f32 %v71, %v263
  %v265 = vand.u32 %v264, 4294901760
  %v266 = vsub.f32 %v264, %v265
  %v267 = vand.u32 %v266, 4294901760
  %268 = vmatmul.mubr.f32.gmra.mrb[0].mxu0 %v267
  %v269 = vpop.f32.mrb[0].mxu0
  %v270 = vadd.f32 %v55, %v269
  %v271 = vpop.f32.mrb[0].mxu0
  %272 = vmatprep.mubr.f32.mxu0 0.0
  %v273 = vand.u32 %v74, 4294901760
  %v274 = vsub.f32 %v74, %v273
  %v275 = vand.u32 %v274, 4294901760
  %v276 = vsub.f32 %v274, %v275
  %v277 = vand.u32 %v276, 4294901760
  %278 = vmatmul.mubr.f32.gmra.mrb[0].mxu0 %v277
  %v279 = vpop.f32.mrb[0].mxu0
  %v280 = vadd.f32 %v55, %v279
  %v281 = vpop.f32.mrb[0].mxu0
  %282 = vmatprep.mubr.f32.mxu0 0.0
  %v283 = vand.u32 %v77, 4294901760
  %v284 = vsub.f32 %v77, %v283
  %v285 = vand.u32 %v284, 4294901760
  %v286 = vsub.f32 %v284, %v285
  %v287 = vand.u32 %v286, 4294901760
  %288 = vmatmul.mubr.f32.gmra.mrb[0].mxu0 %v287
  %v289 = vpop.f32.mrb[0].mxu0
  %v290 = vadd.f32 %v55, %v289
  %v291 = vpop.f32.mrb[0].mxu0
  %292 = vmatprep.mubr.f32.mxu0 0.0
  %v293 = vand.u32 %v80, 4294901760
  %v294 = vsub.f32 %v80, %v293
  %v295 = vand.u32 %v294, 4294901760
  %v296 = vsub.f32 %v294, %v295
  %v297 = vand.u32 %v296, 4294901760
  %298 = vmatmul.mubr.f32.gmra.mrb[0].mxu0 %v297
  %v299 = vpop.f32.mrb[0].mxu0
  %v300 = vadd.f32 %v55, %v299
  %v301 = vpop.f32.mrb[0].mxu0
  %302 = vmatprep.mubr.f32.mxu0 0.0
  %v303 = vand.u32 %v83, 4294901760
  %v304 = vsub.f32 %v83, %v303
  %v305 = vand.u32 %v304, 4294901760
  %v306 = vsub.f32 %v304, %v305
  %v307 = vand.u32 %v306, 4294901760
  %308 = vmatmul.mubr.f32.gmra.mrb[0].mxu0 %v307
  %v309 = vpop.f32.mrb[0].mxu0
  %v310 = vadd.f32 %v55, %v309
  %v311 = vpop.f32.mrb[0].mxu0
  %312 = vmatprep.mubr.f32.mxu0 0.0
  %v313 = vand.u32 %v86, 4294901760
  %v314 = vsub.f32 %v86, %v313
  %v315 = vand.u32 %v314, 4294901760
  %v316 = vsub.f32 %v314, %v315
  %v317 = vand.u32 %v316, 4294901760
  %318 = vmatmul.mubr.f32.gmra.mrb[0].mxu0 %v317
  %v319 = vpop.f32.mrb[0].mxu0
  %v320 = vadd.f32 %v55, %v319
  %v321 = vpop.f32.mrb[0].mxu0
  %322 = vmatprep.mubr.f32.mxu0 0.0
  %v323 = vand.u32 %v89, 4294901760
  %v324 = vsub.f32 %v89, %v323
  %v325 = vand.u32 %v324, 4294901760
  %v326 = vsub.f32 %v324, %v325
  %v327 = vand.u32 %v326, 4294901760
  %328 = vmatmul.mubr.f32.gmra.mrb[0].mxu0 %v327
  %v329 = vpop.f32.mrb[0].mxu0
  %v330 = vadd.f32 %v55, %v329
  %v331 = vpop.f32.mrb[0].mxu0
  %332 = vmatprep.mubr.f32.mxu0 0.0
  %v333 = vand.u32 %v92, 4294901760
  %v334 = vsub.f32 %v92, %v333
  %v335 = vand.u32 %v334, 4294901760
  %v336 = vsub.f32 %v334, %v335
  %v337 = vand.u32 %v336, 4294901760
  %338 = vmatmul.mubr.f32.gmra.mrb[0].mxu0 %v337
  %v339 = vpop.f32.mrb[0].mxu0
  %v340 = vadd.f32 %v55, %v339
  %v341 = vpop.f32.mrb[0].mxu0
  %342 = vmatprep.mubr.f32.mxu0 0.0
  %v343 = vand.u32 %v95, 4294901760
  %v344 = vsub.f32 %v95, %v343
  %v345 = vand.u32 %v344, 4294901760
  %v346 = vsub.f32 %v344, %v345
  %v347 = vand.u32 %v346, 4294901760
  %348 = vmatmul.mubr.f32.gmra.mrb[0].mxu0 %v347
  %v349 = vpop.f32.mrb[0].mxu0
  %v350 = vadd.f32 %v55, %v349
  %v351 = vpop.f32.mrb[0].mxu0
  %352 = vmatprep.mubr.f32.mxu0 0.0
  %v353 = vand.u32 %v98, 4294901760
  %v354 = vsub.f32 %v98, %v353
  %v355 = vand.u32 %v354, 4294901760
  %v356 = vsub.f32 %v354, %v355
  %v357 = vand.u32 %v356, 4294901760
  %358 = vmatmul.mubr.f32.gmra.mrb[0].mxu0 %v357
  %v359 = vpop.f32.mrb[0].mxu0
  %v360 = vadd.f32 %v55, %v359
  %v361 = vpop.f32.mrb[0].mxu0
  %362 = vmatprep.mubr.f32.mxu0 0.0
  %v363 = vand.u32 %v101, 4294901760
  %v364 = vsub.f32 %v101, %v363
  %v365 = vand.u32 %v364, 4294901760
  %v366 = vsub.f32 %v364, %v365
  %v367 = vand.u32 %v366, 4294901760
  %368 = vmatmul.mubr.f32.gmra.mrb[0].mxu0 %v367
  %v369 = vpop.f32.mrb[0].mxu0
  %v370 = vadd.f32 %v55, %v369
  %v371 = vpop.f32.mrb[0].mxu0
  %372 = vmatprep.mubr.f32.mxu0 0.0
  %v373 = vand.u32 %v104, 4294901760
  %v374 = vsub.f32 %v104, %v373
  %v375 = vand.u32 %v374, 4294901760
  %v376 = vsub.f32 %v374, %v375
  %v377 = vand.u32 %v376, 4294901760
  %378 = vmatmul.mubr.f32.gmra.mrb[0].mxu0 %v377
  %v379 = vpop.f32.mrb[0].mxu0
  %v380 = vadd.f32 %v55, %v379
  %v381 = vpop.f32.mrb[0].mxu0
  %382 = vmatprep.mubr.f32.mxu0 0.0
  %v383 = vand.u32 %v107, 4294901760
  %v384 = vsub.f32 %v107, %v383
  %v385 = vand.u32 %v384, 4294901760
  %v386 = vsub.f32 %v384, %v385
  %v387 = vand.u32 %v386, 4294901760
  %388 = vmatmul.mubr.f32.gmra.mrb[0].mxu0 %v387
  %v389 = vpop.f32.mrb[0].mxu0
  %v390 = vadd.f32 %v55, %v389
  %v391 = vpop.f32.mrb[0].mxu0
  %392 = vmatprep.mubr.f32.mxu0 0.0
  %v393 = vand.u32 %v110, 4294901760
  %v394 = vsub.f32 %v110, %v393
  %v395 = vand.u32 %v394, 4294901760
  %v396 = vsub.f32 %v394, %v395
  %v397 = vand.u32 %v396, 4294901760
  %398 = vmatmul.mubr.f32.gmra.mrb[0].mxu0 %v397
  %v399 = vpop.f32.mrb[0].mxu0
  %v400 = vadd.f32 %v55, %v399
  %v401 = vpop.f32.mrb[0].mxu0
  %402 = vmatprep.mubr.f32.mxu0 0.0
  %v403 = vand.u32 %v113, 4294901760
  %v404 = vsub.f32 %v113, %v403
  %v405 = vand.u32 %v404, 4294901760
  %v406 = vsub.f32 %v404, %v405
  %v407 = vand.u32 %v406, 4294901760
  %408 = vmatmul.mubr.f32.gmra.mrb[0].mxu0 %v407
  %v409 = vpop.f32.mrb[0].mxu0
  %v410 = vadd.f32 %v55, %v409
  %v411 = vpop.f32.mrb[0].mxu0
  %412 = vmatprep.mubr.f32.mxu0 0.0
  %v413 = vand.u32 %v116, 4294901760
  %v414 = vsub.f32 %v116, %v413
  %v415 = vand.u32 %v414, 4294901760
  %v416 = vsub.f32 %v414, %v415
  %v417 = vand.u32 %v416, 4294901760
  %418 = vmatmul.mubr.f32.gmra.mrb[0].mxu0 %v417
  %v419 = vpop.f32.mrb[0].mxu0
  %v420 = vadd.f32 %v55, %v419
  %v421 = vpop.f32.mrb[0].mxu0
  %422 = vmatprep.mubr.f32.mxu0 0.0
  %v423 = vand.u32 %v119, 4294901760
  %v424 = vsub.f32 %v119, %v423
  %v425 = vand.u32 %v424, 4294901760
  %v426 = vsub.f32 %v424, %v425
  %v427 = vand.u32 %v426, 4294901760
  %428 = vmatmul.mubr.f32.gmra.mrb[0].mxu0 %v427
  %v429 = vpop.f32.mrb[0].mxu0
  %v430 = vadd.f32 %v55, %v429
  %v431 = vpop.f32.mrb[0].mxu0
  %432 = vmatprep.mubr.f32.mxu0 0.0
  %v433 = vand.u32 %v122, 4294901760
  %v434 = vsub.f32 %v122, %v433
  %v435 = vand.u32 %v434, 4294901760
  %v436 = vsub.f32 %v434, %v435
  %v437 = vand.u32 %v436, 4294901760
  %438 = vmatmul.mubr.f32.gmra.mrb[0].mxu0 %v437
  %v439 = vpop.f32.mrb[0].mxu0
  %v440 = vadd.f32 %v55, %v439
  %v441 = vpop.f32.mrb[0].mxu0
  %442 = vmatprep.mubr.f32.mxu0 0.0
  %v443 = vand.u32 %v125, 4294901760
  %v444 = vsub.f32 %v125, %v443
  %v445 = vand.u32 %v444, 4294901760
  %v446 = vsub.f32 %v444, %v445
  %v447 = vand.u32 %v446, 4294901760
  %448 = vmatmul.mubr.f32.gmra.mrb[0].mxu0 %v447
  %v449 = vpop.f32.mrb[0].mxu0
  %v450 = vadd.f32 %v55, %v449
  %v451 = vpop.f32.mrb[0].mxu0
  %452 = vmatprep.mubr.f32.mxu0 0.0
  %v453 = vand.u32 %v128, 4294901760
  %v454 = vsub.f32 %v128, %v453
  %v455 = vand.u32 %v454, 4294901760
  %v456 = vsub.f32 %v454, %v455
  %v457 = vand.u32 %v456, 4294901760
  %458 = vmatmul.mubr.f32.gmra.mrb[0].mxu0 %v457
  %v459 = vpop.f32.mrb[0].mxu0
  %v460 = vadd.f32 %v55, %v459
  %v461 = vpop.f32.mrb[0].mxu0
  %462 = vmatprep.mubr.f32.mxu0 0.0
  %v463 = vand.u32 %v131, 4294901760
  %v464 = vsub.f32 %v131, %v463
  %v465 = vand.u32 %v464, 4294901760
  %v466 = vsub.f32 %v464, %v465
  %v467 = vand.u32 %v466, 4294901760
  %468 = vmatmul.mubr.f32.gmra.mrb[0].mxu0 %v467
  %v469 = vpop.f32.mrb[0].mxu0
  %v470 = vadd.f32 %v55, %v469
  %v471 = vpop.f32.mrb[0].mxu0
  %472 = vmatprep.mubr.f32.mxu0 0.0
  %v473 = vand.u32 %v134, 4294901760
  %v474 = vsub.f32 %v134, %v473
  %v475 = vand.u32 %v474, 4294901760
  %v476 = vsub.f32 %v474, %v475
  %v477 = vand.u32 %v476, 4294901760
  %478 = vmatmul.mubr.f32.gmra.mrb[0].mxu0 %v477
  %v479 = vpop.f32.mrb[0].mxu0
  %v480 = vadd.f32 %v55, %v479
  %v481 = vpop.f32.mrb[0].mxu0
  %482 = vmatprep.mubr.f32.mxu0 0.0
  %v483 = vand.u32 %v137, 4294901760
  %v484 = vsub.f32 %v137, %v483
  %v485 = vand.u32 %v484, 4294901760
  %v486 = vsub.f32 %v484, %v485
  %v487 = vand.u32 %v486, 4294901760
  %488 = vmatmul.mubr.f32.gmra.mrb[0].mxu0 %v487
  %v489 = vpop.f32.mrb[0].mxu0
  %v490 = vadd.f32 %v55, %v489
  %v491 = vpop.f32.mrb[0].mxu0
  %492 = vmatprep.mubr.f32.mxu0 0.0
  %v493 = vand.u32 %v140, 4294901760
  %v494 = vsub.f32 %v140, %v493
  %v495 = vand.u32 %v494, 4294901760
  %v496 = vsub.f32 %v494, %v495
  %v497 = vand.u32 %v496, 4294901760
  %498 = vmatmul.mubr.f32.gmra.mrb[0].mxu0 %v497
  %v499 = vpop.f32.mrb[0].mxu0
  %v500 = vadd.f32 %v55, %v499
  %v501 = vpop.f32.mrb[0].mxu0
  %502 = vmatprep.mubr.f32.mxu0 0.0
  %v503 = vand.u32 %v143, 4294901760
  %v504 = vsub.f32 %v143, %v503
  %v505 = vand.u32 %v504, 4294901760
  %v506 = vsub.f32 %v504, %v505
  %v507 = vand.u32 %v506, 4294901760
  %508 = vmatmul.mubr.f32.gmra.mrb[0].mxu0 %v507
  %v509 = vpop.f32.mrb[0].mxu0
  %v510 = vadd.f32 %v55, %v509
  %v511 = vpop.f32.mrb[0].mxu0
  %512 = vmatprep.mubr.f32.mxu0 0.0
  %v513 = vand.u32 %v146, 4294901760
  %v514 = vsub.f32 %v146, %v513
  %v515 = vand.u32 %v514, 4294901760
  %v516 = vsub.f32 %v514, %v515
  %v517 = vand.u32 %v516, 4294901760
  %518 = vmatmul.mubr.f32.gmra.mrb[0].mxu0 %v517
  %v519 = vpop.f32.mrb[0].mxu0
  %v520 = vadd.f32 %v55, %v519
  %v521 = vpop.f32.mrb[0].mxu0
  %522 = vmatprep.mubr.f32.mxu0 0.0
  %v523 = vand.u32 %v149, 4294901760
  %v524 = vsub.f32 %v149, %v523
  %v525 = vand.u32 %v524, 4294901760
  %v526 = vsub.f32 %v524, %v525
  %v527 = vand.u32 %v526, 4294901760
  %528 = vmatmul.mubr.f32.gmra.mrb[0].mxu0 %v527
  %v529 = vpop.f32.mrb[0].mxu0
  %v530 = vadd.f32 %v55, %v529
  %v531 = vpop.f32.mrb[0].mxu0
  %532 = vmatprep.mubr.f32.mxu0 0.0
  %v533 = vand.u32 %v152, 4294901760
  %v534 = vsub.f32 %v152, %v533
  %v535 = vand.u32 %v534, 4294901760
  %v536 = vsub.f32 %v534, %v535
  %v537 = vand.u32 %v536, 4294901760
  %538 = vmatmul.mubr.f32.gmra.mrb[0].mxu0 %v537
  %v539 = vpop.f32.mrb[0].mxu0
  %v540 = vadd.f32 %v55, %v539
  %v541 = vpop.f32.mrb[0].mxu0
  %542 = vdwg.mxu0
  %543 = vmatprep.subr.mxu0 0.0
  %v544 = vand.u32 %v46, 4294901760
  %v545 = vsub.f32 %v46, %v544
  %v546 = vand.u32 %v545, 4294901760
  %v547 = vsub.f32 %v545, %v546
  %v548 = vand.u32 %v547, 4294901760
  %549 = vmatpush1.msra.mxu0 %v548
  %550 = vmatprep.subr.mxu0 0.0
  %v551 = vand.u32 %v47, 4294901760
  %v552 = vsub.f32 %v47, %v551
  %v553 = vand.u32 %v552, 4294901760
  %v554 = vsub.f32 %v552, %v553
  %v555 = vand.u32 %v554, 4294901760
  %556 = vmatpush1.msra.mxu0 %v555
  %557 = vmatprep.subr.mxu0 0.0
  %v558 = vand.u32 %v48, 4294901760
  %v559 = vsub.f32 %v48, %v558
  %v560 = vand.u32 %v559, 4294901760
  %v561 = vsub.f32 %v559, %v560
  %v562 = vand.u32 %v561, 4294901760
  %563 = vmatpush1.msra.mxu0 %v562
  %564 = vmatprep.subr.mxu0 0.0
  %v565 = vand.u32 %v49, 4294901760
  %v566 = vsub.f32 %v49, %v565
  %v567 = vand.u32 %v566, 4294901760
  %v568 = vsub.f32 %v566, %v567
  %v569 = vand.u32 %v568, 4294901760
  %570 = vmatpush1.msra.mxu0 %v569
  %571 = vmatprep.subr.mxu0 0.0
  %572 = vmatpush1.msra.mxu0 0.0
  %573 = vmatprep.subr.mxu0 0.0
  %574 = vmatpush1.msra.mxu0 0.0
  %575 = vmatprep.subr.mxu0 0.0
  %576 = vmatpush1.msra.mxu0 0.0
  %577 = vmatprep.subr.mxu0 0.0
  %578 = vmatpush1.msra.mxu0 0.0
  %579 = vmatprep.subr.mxu0 0.0
  %580 = vmatpush1.msra.mxu0 0.0
  %581 = vmatprep.subr.mxu0 0.0
  %582 = vmatpush1.msra.mxu0 0.0
  %583 = vmatprep.subr.mxu0 0.0
  %584 = vmatpush1.msra.mxu0 0.0
  %585 = vmatprep.subr.mxu0 0.0
  %586 = vmatpush1.msra.mxu0 0.0
  %587 = vmatprep.subr.mxu0 0.0
  %588 = vmatpush1.msra.mxu0 0.0
  %589 = vmatprep.subr.mxu0 0.0
  %590 = vmatpush1.msra.mxu0 0.0
  %591 = vmatprep.subr.mxu0 0.0
  %592 = vmatpush1.msra.mxu0 0.0
  %593 = vmatprep.subr.mxu0 0.0
  %594 = vmatpush1.msra.mxu0 0.0
  %595 = vmatprep.subr.mxu0 0.0
  %596 = vmatpush1.msra.mxu0 0.0
  %597 = vmatprep.subr.mxu0 0.0
  %598 = vmatpush1.msra.mxu0 0.0
  %599 = vmatprep.subr.mxu0 0.0
  %600 = vmatpush1.msra.mxu0 0.0
  %601 = vmatprep.subr.mxu0 0.0
  %602 = vmatpush1.msra.mxu0 0.0
  %603 = vmatprep.subr.mxu0 0.0
  %604 = vmatpush1.msra.mxu0 0.0
  %605 = vmatprep.subr.mxu0 0.0
  %606 = vmatpush1.msra.mxu0 0.0
  %607 = vmatprep.subr.mxu0 0.0
  %608 = vmatpush1.msra.mxu0 0.0
  %609 = vmatprep.subr.mxu0 0.0
  %610 = vmatpush1.msra.mxu0 0.0
  %611 = vmatprep.subr.mxu0 0.0
  %612 = vmatpush1.msra.mxu0 0.0
  %613 = vmatprep.subr.mxu0 0.0
  %614 = vmatpush1.msra.mxu0 0.0
  %615 = vmatprep.subr.mxu0 0.0
  %616 = vmatpush1.msra.mxu0 0.0
  %617 = vmatprep.subr.mxu0 0.0
  %618 = vmatpush1.msra.mxu0 0.0
  %619 = vmatprep.subr.mxu0 0.0
  %620 = vmatpush1.msra.mxu0 0.0
  %621 = vmatprep.subr.mxu0 0.0
  %622 = vmatpush1.msra.mxu0 0.0
  %623 = vmatprep.subr.mxu0 0.0
  %624 = vmatpush1.msra.mxu0 0.0
  %625 = vmatprep.subr.mxu0 0.0
  %626 = vmatpush1.msra.mxu0 0.0
  %627 = vmatprep.mubr.f32.mxu0 0.0
  %v628 = vand.u32 %v59, 4294901760
  %629 = vmatmul.mubr.f32.gmra.mrb[0].mxu0 %v628
  %v630 = vpop.f32.mrb[0].mxu0
  %v631 = vadd.f32 %v230, %v630
  %v632 = vpop.f32.mrb[0].mxu0
  %633 = vmatprep.mubr.f32.mxu0 0.0
  %v634 = vand.u32 %v62, 4294901760
  %635 = vmatmul.mubr.f32.gmra.mrb[0].mxu0 %v634
  %v636 = vpop.f32.mrb[0].mxu0
  %v637 = vadd.f32 %v240, %v636
  %v638 = vpop.f32.mrb[0].mxu0
  %639 = vmatprep.mubr.f32.mxu0 0.0
  %v640 = vand.u32 %v65, 4294901760
  %641 = vmatmul.mubr.f32.gmra.mrb[0].mxu0 %v640
  %v642 = vpop.f32.mrb[0].mxu0
  %v643 = vadd.f32 %v250, %v642
  %v644 = vpop.f32.mrb[0].mxu0
  %645 = vmatprep.mubr.f32.mxu0 0.0
  %v646 = vand.u32 %v68, 4294901760
  %647 = vmatmul.mubr.f32.gmra.mrb[0].mxu0 %v646
  %v648 = vpop.f32.mrb[0].mxu0
  %v649 = vadd.f32 %v260, %v648
  %v650 = vpop.f32.mrb[0].mxu0
  %651 = vmatprep.mubr.f32.mxu0 0.0
  %v652 = vand.u32 %v71, 4294901760
  %653 = vmatmul.mubr.f32.gmra.mrb[0].mxu0 %v652
  %v654 = vpop.f32.mrb[0].mxu0
  %v655 = vadd.f32 %v270, %v654
  %v656 = vpop.f32.mrb[0].mxu0
  %657 = vmatprep.mubr.f32.mxu0 0.0
  %v658 = vand.u32 %v74, 4294901760
  %659 = vmatmul.mubr.f32.gmra.mrb[0].mxu0 %v658
  %v660 = vpop.f32.mrb[0].mxu0
  %v661 = vadd.f32 %v280, %v660
  %v662 = vpop.f32.mrb[0].mxu0
  %663 = vmatprep.mubr.f32.mxu0 0.0
  %v664 = vand.u32 %v77, 4294901760
  %665 = vmatmul.mubr.f32.gmra.mrb[0].mxu0 %v664
  %v666 = vpop.f32.mrb[0].mxu0
  %v667 = vadd.f32 %v290, %v666
  %v668 = vpop.f32.mrb[0].mxu0
  %669 = vmatprep.mubr.f32.mxu0 0.0
  %v670 = vand.u32 %v80, 4294901760
  %671 = vmatmul.mubr.f32.gmra.mrb[0].mxu0 %v670
  %v672 = vpop.f32.mrb[0].mxu0
  %v673 = vadd.f32 %v300, %v672
  %v674 = vpop.f32.mrb[0].mxu0
  %675 = vmatprep.mubr.f32.mxu0 0.0
  %v676 = vand.u32 %v83, 4294901760
  %677 = vmatmul.mubr.f32.gmra.mrb[0].mxu0 %v676
  %v678 = vpop.f32.mrb[0].mxu0
  %v679 = vadd.f32 %v310, %v678
  %v680 = vpop.f32.mrb[0].mxu0
  %681 = vmatprep.mubr.f32.mxu0 0.0
  %v682 = vand.u32 %v86, 4294901760
  %683 = vmatmul.mubr.f32.gmra.mrb[0].mxu0 %v682
  %v684 = vpop.f32.mrb[0].mxu0
  %v685 = vadd.f32 %v320, %v684
  %v686 = vpop.f32.mrb[0].mxu0
  %687 = vmatprep.mubr.f32.mxu0 0.0
  %v688 = vand.u32 %v89, 4294901760
  %689 = vmatmul.mubr.f32.gmra.mrb[0].mxu0 %v688
  %v690 = vpop.f32.mrb[0].mxu0
  %v691 = vadd.f32 %v330, %v690
  %v692 = vpop.f32.mrb[0].mxu0
  %693 = vmatprep.mubr.f32.mxu0 0.0
  %v694 = vand.u32 %v92, 4294901760
  %695 = vmatmul.mubr.f32.gmra.mrb[0].mxu0 %v694
  %v696 = vpop.f32.mrb[0].mxu0
  %v697 = vadd.f32 %v340, %v696
  %v698 = vpop.f32.mrb[0].mxu0
  %699 = vmatprep.mubr.f32.mxu0 0.0
  %v700 = vand.u32 %v95, 4294901760
  %701 = vmatmul.mubr.f32.gmra.mrb[0].mxu0 %v700
  %v702 = vpop.f32.mrb[0].mxu0
  %v703 = vadd.f32 %v350, %v702
  %v704 = vpop.f32.mrb[0].mxu0
  %705 = vmatprep.mubr.f32.mxu0 0.0
  %v706 = vand.u32 %v98, 4294901760
  %707 = vmatmul.mubr.f32.gmra.mrb[0].mxu0 %v706
  %v708 = vpop.f32.mrb[0].mxu0
  %v709 = vadd.f32 %v360, %v708
  %v710 = vpop.f32.mrb[0].mxu0
  %711 = vmatprep.mubr.f32.mxu0 0.0
  %v712 = vand.u32 %v101, 4294901760
  %713 = vmatmul.mubr.f32.gmra.mrb[0].mxu0 %v712
  %v714 = vpop.f32.mrb[0].mxu0
  %v715 = vadd.f32 %v370, %v714
  %v716 = vpop.f32.mrb[0].mxu0
  %717 = vmatprep.mubr.f32.mxu0 0.0
  %v718 = vand.u32 %v104, 4294901760
  %719 = vmatmul.mubr.f32.gmra.mrb[0].mxu0 %v718
  %v720 = vpop.f32.mrb[0].mxu0
  %v721 = vadd.f32 %v380, %v720
  %v722 = vpop.f32.mrb[0].mxu0
  %723 = vmatprep.mubr.f32.mxu0 0.0
  %v724 = vand.u32 %v107, 4294901760
  %725 = vmatmul.mubr.f32.gmra.mrb[0].mxu0 %v724
  %v726 = vpop.f32.mrb[0].mxu0
  %v727 = vadd.f32 %v390, %v726
  %v728 = vpop.f32.mrb[0].mxu0
  %729 = vmatprep.mubr.f32.mxu0 0.0
  %v730 = vand.u32 %v110, 4294901760
  %731 = vmatmul.mubr.f32.gmra.mrb[0].mxu0 %v730
  %v732 = vpop.f32.mrb[0].mxu0
  %v733 = vadd.f32 %v400, %v732
  %v734 = vpop.f32.mrb[0].mxu0
  %735 = vmatprep.mubr.f32.mxu0 0.0
  %v736 = vand.u32 %v113, 4294901760
  %737 = vmatmul.mubr.f32.gmra.mrb[0].mxu0 %v736
  %v738 = vpop.f32.mrb[0].mxu0
  %v739 = vadd.f32 %v410, %v738
  %v740 = vpop.f32.mrb[0].mxu0
  %741 = vmatprep.mubr.f32.mxu0 0.0
  %v742 = vand.u32 %v116, 4294901760
  %743 = vmatmul.mubr.f32.gmra.mrb[0].mxu0 %v742
  %v744 = vpop.f32.mrb[0].mxu0
  %v745 = vadd.f32 %v420, %v744
  %v746 = vpop.f32.mrb[0].mxu0
  %747 = vmatprep.mubr.f32.mxu0 0.0
  %v748 = vand.u32 %v119, 4294901760
  %749 = vmatmul.mubr.f32.gmra.mrb[0].mxu0 %v748
  %v750 = vpop.f32.mrb[0].mxu0
  %v751 = vadd.f32 %v430, %v750
  %v752 = vpop.f32.mrb[0].mxu0
  %753 = vmatprep.mubr.f32.mxu0 0.0
  %v754 = vand.u32 %v122, 4294901760
  %755 = vmatmul.mubr.f32.gmra.mrb[0].mxu0 %v754
  %v756 = vpop.f32.mrb[0].mxu0
  %v757 = vadd.f32 %v440, %v756
  %v758 = vpop.f32.mrb[0].mxu0
  %759 = vmatprep.mubr.f32.mxu0 0.0
  %v760 = vand.u32 %v125, 4294901760
  %761 = vmatmul.mubr.f32.gmra.mrb[0].mxu0 %v760
  %v762 = vpop.f32.mrb[0].mxu0
  %v763 = vadd.f32 %v450, %v762
  %v764 = vpop.f32.mrb[0].mxu0
  %765 = vmatprep.mubr.f32.mxu0 0.0
  %v766 = vand.u32 %v128, 4294901760
  %767 = vmatmul.mubr.f32.gmra.mrb[0].mxu0 %v766
  %v768 = vpop.f32.mrb[0].mxu0
  %v769 = vadd.f32 %v460, %v768
  %v770 = vpop.f32.mrb[0].mxu0
  %771 = vmatprep.mubr.f32.mxu0 0.0
  %v772 = vand.u32 %v131, 4294901760
  %773 = vmatmul.mubr.f32.gmra.mrb[0].mxu0 %v772
  %v774 = vpop.f32.mrb[0].mxu0
  %v775 = vadd.f32 %v470, %v774
  %v776 = vpop.f32.mrb[0].mxu0
  %777 = vmatprep.mubr.f32.mxu0 0.0
  %v778 = vand.u32 %v134, 4294901760
  %779 = vmatmul.mubr.f32.gmra.mrb[0].mxu0 %v778
  %v780 = vpop.f32.mrb[0].mxu0
  %v781 = vadd.f32 %v480, %v780
  %v782 = vpop.f32.mrb[0].mxu0
  %783 = vmatprep.mubr.f32.mxu0 0.0
  %v784 = vand.u32 %v137, 4294901760
  %785 = vmatmul.mubr.f32.gmra.mrb[0].mxu0 %v784
  %v786 = vpop.f32.mrb[0].mxu0
  %v787 = vadd.f32 %v490, %v786
  %v788 = vpop.f32.mrb[0].mxu0
  %789 = vmatprep.mubr.f32.mxu0 0.0
  %v790 = vand.u32 %v140, 4294901760
  %791 = vmatmul.mubr.f32.gmra.mrb[0].mxu0 %v790
  %v792 = vpop.f32.mrb[0].mxu0
  %v793 = vadd.f32 %v500, %v792
  %v794 = vpop.f32.mrb[0].mxu0
  %795 = vmatprep.mubr.f32.mxu0 0.0
  %v796 = vand.u32 %v143, 4294901760
  %797 = vmatmul.mubr.f32.gmra.mrb[0].mxu0 %v796
  %v798 = vpop.f32.mrb[0].mxu0
  %v799 = vadd.f32 %v510, %v798
  %v800 = vpop.f32.mrb[0].mxu0
  %801 = vmatprep.mubr.f32.mxu0 0.0
  %v802 = vand.u32 %v146, 4294901760
  %803 = vmatmul.mubr.f32.gmra.mrb[0].mxu0 %v802
  %v804 = vpop.f32.mrb[0].mxu0
  %v805 = vadd.f32 %v520, %v804
  %v806 = vpop.f32.mrb[0].mxu0
  %807 = vmatprep.mubr.f32.mxu0 0.0
  %v808 = vand.u32 %v149, 4294901760
  %809 = vmatmul.mubr.f32.gmra.mrb[0].mxu0 %v808
  %v810 = vpop.f32.mrb[0].mxu0
  %v811 = vadd.f32 %v530, %v810
  %v812 = vpop.f32.mrb[0].mxu0
  %813 = vmatprep.mubr.f32.mxu0 0.0
  %v814 = vand.u32 %v152, 4294901760
  %815 = vmatmul.mubr.f32.gmra.mrb[0].mxu0 %v814
  %v816 = vpop.f32.mrb[0].mxu0
  %v817 = vadd.f32 %v540, %v816
  %v818 = vpop.f32.mrb[0].mxu0
  %819 = vdwg.mxu0
  %820 = vmatprep.subr.mxu0 0.0
  %v821 = vand.u32 %v46, 4294901760
  %v822 = vsub.f32 %v46, %v821
  %823 = vmatpush1.msra.mxu0 %v822
  %824 = vmatprep.subr.mxu0 0.0
  %v825 = vand.u32 %v47, 4294901760
  %v826 = vsub.f32 %v47, %v825
  %827 = vmatpush1.msra.mxu0 %v826
  %828 = vmatprep.subr.mxu0 0.0
  %v829 = vand.u32 %v48, 4294901760
  %v830 = vsub.f32 %v48, %v829
  %831 = vmatpush1.msra.mxu0 %v830
  %832 = vmatprep.subr.mxu0 0.0
  %v833 = vand.u32 %v49, 4294901760
  %v834 = vsub.f32 %v49, %v833
  %835 = vmatpush1.msra.mxu0 %v834
  %836 = vmatprep.subr.mxu0 0.0
  %837 = vmatpush1.msra.mxu0 0.0
  %838 = vmatprep.subr.mxu0 0.0
  %839 = vmatpush1.msra.mxu0 0.0
  %840 = vmatprep.subr.mxu0 0.0
  %841 = vmatpush1.msra.mxu0 0.0
  %842 = vmatprep.subr.mxu0 0.0
  %843 = vmatpush1.msra.mxu0 0.0
  %844 = vmatprep.subr.mxu0 0.0
  %845 = vmatpush1.msra.mxu0 0.0
  %846 = vmatprep.subr.mxu0 0.0
  %847 = vmatpush1.msra.mxu0 0.0
  %848 = vmatprep.subr.mxu0 0.0
  %849 = vmatpush1.msra.mxu0 0.0
  %850 = vmatprep.subr.mxu0 0.0
  %851 = vmatpush1.msra.mxu0 0.0
  %852 = vmatprep.subr.mxu0 0.0
  %853 = vmatpush1.msra.mxu0 0.0
  %854 = vmatprep.subr.mxu0 0.0
  %855 = vmatpush1.msra.mxu0 0.0
  %856 = vmatprep.subr.mxu0 0.0
  %857 = vmatpush1.msra.mxu0 0.0
  %858 = vmatprep.subr.mxu0 0.0
  %859 = vmatpush1.msra.mxu0 0.0
  %860 = vmatprep.subr.mxu0 0.0
  %861 = vmatpush1.msra.mxu0 0.0
  %862 = vmatprep.subr.mxu0 0.0
  %863 = vmatpush1.msra.mxu0 0.0
  %864 = vmatprep.subr.mxu0 0.0
  %865 = vmatpush1.msra.mxu0 0.0
  %866 = vmatprep.subr.mxu0 0.0
  %867 = vmatpush1.msra.mxu0 0.0
  %868 = vmatprep.subr.mxu0 0.0
  %869 = vmatpush1.msra.mxu0 0.0
  %870 = vmatprep.subr.mxu0 0.0
  %871 = vmatpush1.msra.mxu0 0.0
  %872 = vmatprep.subr.mxu0 0.0
  %873 = vmatpush1.msra.mxu0 0.0
  %874 = vmatprep.subr.mxu0 0.0
  %875 = vmatpush1.msra.mxu0 0.0
  %876 = vmatprep.subr.mxu0 0.0
  %877 = vmatpush1.msra.mxu0 0.0
  %878 = vmatprep.subr.mxu0 0.0
  %879 = vmatpush1.msra.mxu0 0.0
  %880 = vmatprep.subr.mxu0 0.0
  %881 = vmatpush1.msra.mxu0 0.0
  %882 = vmatprep.subr.mxu0 0.0
  %883 = vmatpush1.msra.mxu0 0.0
  %884 = vmatprep.subr.mxu0 0.0
  %885 = vmatpush1.msra.mxu0 0.0
  %886 = vmatprep.subr.mxu0 0.0
  %887 = vmatpush1.msra.mxu0 0.0
  %888 = vmatprep.subr.mxu0 0.0
  %889 = vmatpush1.msra.mxu0 0.0
  %890 = vmatprep.subr.mxu0 0.0
  %891 = vmatpush1.msra.mxu0 0.0
  %892 = vmatprep.mubr.f32.mxu0 0.0
  %v893 = vand.u32 %v59, 4294901760
  %v894 = vsub.f32 %v59, %v893
  %895 = vmatmul.mubr.f32.gmra.mrb[0].mxu0 %v894
  %v896 = vpop.f32.mrb[0].mxu0
  %v897 = vadd.f32 %v631, %v896
  %v898 = vpop.f32.mrb[0].mxu0
  %899 = vmatprep.mubr.f32.mxu0 0.0
  %v900 = vand.u32 %v62, 4294901760
  %v901 = vsub.f32 %v62, %v900
  %902 = vmatmul.mubr.f32.gmra.mrb[0].mxu0 %v901
  %v903 = vpop.f32.mrb[0].mxu0
  %v904 = vadd.f32 %v637, %v903
  %v905 = vpop.f32.mrb[0].mxu0
  %906 = vmatprep.mubr.f32.mxu0 0.0
  %v907 = vand.u32 %v65, 4294901760
  %v908 = vsub.f32 %v65, %v907
  %909 = vmatmul.mubr.f32.gmra.mrb[0].mxu0 %v908
  %v910 = vpop.f32.mrb[0].mxu0
  %v911 = vadd.f32 %v643, %v910
  %v912 = vpop.f32.mrb[0].mxu0
  %913 = vmatprep.mubr.f32.mxu0 0.0
  %v914 = vand.u32 %v68, 4294901760
  %v915 = vsub.f32 %v68, %v914
  %916 = vmatmul.mubr.f32.gmra.mrb[0].mxu0 %v915
  %v917 = vpop.f32.mrb[0].mxu0
  %v918 = vadd.f32 %v649, %v917
  %v919 = vpop.f32.mrb[0].mxu0
  %920 = vmatprep.mubr.f32.mxu0 0.0
  %v921 = vand.u32 %v71, 4294901760
  %v922 = vsub.f32 %v71, %v921
  %923 = vmatmul.mubr.f32.gmra.mrb[0].mxu0 %v922
  %v924 = vpop.f32.mrb[0].mxu0
  %v925 = vadd.f32 %v655, %v924
  %v926 = vpop.f32.mrb[0].mxu0
  %927 = vmatprep.mubr.f32.mxu0 0.0
  %v928 = vand.u32 %v74, 4294901760
  %v929 = vsub.f32 %v74, %v928
  %930 = vmatmul.mubr.f32.gmra.mrb[0].mxu0 %v929
  %v931 = vpop.f32.mrb[0].mxu0
  %v932 = vadd.f32 %v661, %v931
  %v933 = vpop.f32.mrb[0].mxu0
  %934 = vmatprep.mubr.f32.mxu0 0.0
  %v935 = vand.u32 %v77, 4294901760
  %v936 = vsub.f32 %v77, %v935
  %937 = vmatmul.mubr.f32.gmra.mrb[0].mxu0 %v936
  %v938 = vpop.f32.mrb[0].mxu0
  %v939 = vadd.f32 %v667, %v938
  %v940 = vpop.f32.mrb[0].mxu0
  %941 = vmatprep.mubr.f32.mxu0 0.0
  %v942 = vand.u32 %v80, 4294901760
  %v943 = vsub.f32 %v80, %v942
  %944 = vmatmul.mubr.f32.gmra.mrb[0].mxu0 %v943
  %v945 = vpop.f32.mrb[0].mxu0
  %v946 = vadd.f32 %v673, %v945
  %v947 = vpop.f32.mrb[0].mxu0
  %948 = vmatprep.mubr.f32.mxu0 0.0
  %v949 = vand.u32 %v83, 4294901760
  %v950 = vsub.f32 %v83, %v949
  %951 = vmatmul.mubr.f32.gmra.mrb[0].mxu0 %v950
  %v952 = vpop.f32.mrb[0].mxu0
  %v953 = vadd.f32 %v679, %v952
  %v954 = vpop.f32.mrb[0].mxu0
  %955 = vmatprep.mubr.f32.mxu0 0.0
  %v956 = vand.u32 %v86, 4294901760
  %v957 = vsub.f32 %v86, %v956
  %958 = vmatmul.mubr.f32.gmra.mrb[0].mxu0 %v957
  %v959 = vpop.f32.mrb[0].mxu0
  %v960 = vadd.f32 %v685, %v959
  %v961 = vpop.f32.mrb[0].mxu0
  %962 = vmatprep.mubr.f32.mxu0 0.0
  %v963 = vand.u32 %v89, 4294901760
  %v964 = vsub.f32 %v89, %v963
  %965 = vmatmul.mubr.f32.gmra.mrb[0].mxu0 %v964
  %v966 = vpop.f32.mrb[0].mxu0
  %v967 = vadd.f32 %v691, %v966
  %v968 = vpop.f32.mrb[0].mxu0
  %969 = vmatprep.mubr.f32.mxu0 0.0
  %v970 = vand.u32 %v92, 4294901760
  %v971 = vsub.f32 %v92, %v970
  %972 = vmatmul.mubr.f32.gmra.mrb[0].mxu0 %v971
  %v973 = vpop.f32.mrb[0].mxu0
  %v974 = vadd.f32 %v697, %v973
  %v975 = vpop.f32.mrb[0].mxu0
  %976 = vmatprep.mubr.f32.mxu0 0.0
  %v977 = vand.u32 %v95, 4294901760
  %v978 = vsub.f32 %v95, %v977
  %979 = vmatmul.mubr.f32.gmra.mrb[0].mxu0 %v978
  %v980 = vpop.f32.mrb[0].mxu0
  %v981 = vadd.f32 %v703, %v980
  %v982 = vpop.f32.mrb[0].mxu0
  %983 = vmatprep.mubr.f32.mxu0 0.0
  %v984 = vand.u32 %v98, 4294901760
  %v985 = vsub.f32 %v98, %v984
  %986 = vmatmul.mubr.f32.gmra.mrb[0].mxu0 %v985
  %v987 = vpop.f32.mrb[0].mxu0
  %v988 = vadd.f32 %v709, %v987
  %v989 = vpop.f32.mrb[0].mxu0
  %990 = vmatprep.mubr.f32.mxu0 0.0
  %v991 = vand.u32 %v101, 4294901760
  %v992 = vsub.f32 %v101, %v991
  %993 = vmatmul.mubr.f32.gmra.mrb[0].mxu0 %v992
  %v994 = vpop.f32.mrb[0].mxu0
  %v995 = vadd.f32 %v715, %v994
  %v996 = vpop.f32.mrb[0].mxu0
  %997 = vmatprep.mubr.f32.mxu0 0.0
  %v998 = vand.u32 %v104, 4294901760
  %v999 = vsub.f32 %v104, %v998
  %1000 = vmatmul.mubr.f32.gmra.mrb[0].mxu0 %v999
  %v1001 = vpop.f32.mrb[0].mxu0
  %v1002 = vadd.f32 %v721, %v1001
  %v1003 = vpop.f32.mrb[0].mxu0
  %1004 = vmatprep.mubr.f32.mxu0 0.0
  %v1005 = vand.u32 %v107, 4294901760
  %v1006 = vsub.f32 %v107, %v1005
  %1007 = vmatmul.mubr.f32.gmra.mrb[0].mxu0 %v1006
  %v1008 = vpop.f32.mrb[0].mxu0
  %v1009 = vadd.f32 %v727, %v1008
  %v1010 = vpop.f32.mrb[0].mxu0
  %1011 = vmatprep.mubr.f32.mxu0 0.0
  %v1012 = vand.u32 %v110, 4294901760
  %v1013 = vsub.f32 %v110, %v1012
  %1014 = vmatmul.mubr.f32.gmra.mrb[0].mxu0 %v1013
  %v1015 = vpop.f32.mrb[0].mxu0
  %v1016 = vadd.f32 %v733, %v1015
  %v1017 = vpop.f32.mrb[0].mxu0
  %1018 = vmatprep.mubr.f32.mxu0 0.0
  %v1019 = vand.u32 %v113, 4294901760
  %v1020 = vsub.f32 %v113, %v1019
  %1021 = vmatmul.mubr.f32.gmra.mrb[0].mxu0 %v1020
  %v1022 = vpop.f32.mrb[0].mxu0
  %v1023 = vadd.f32 %v739, %v1022
  %v1024 = vpop.f32.mrb[0].mxu0
  %1025 = vmatprep.mubr.f32.mxu0 0.0
  %v1026 = vand.u32 %v116, 4294901760
  %v1027 = vsub.f32 %v116, %v1026
  %1028 = vmatmul.mubr.f32.gmra.mrb[0].mxu0 %v1027
  %v1029 = vpop.f32.mrb[0].mxu0
  %v1030 = vadd.f32 %v745, %v1029
  %v1031 = vpop.f32.mrb[0].mxu0
  %1032 = vmatprep.mubr.f32.mxu0 0.0
  %v1033 = vand.u32 %v119, 4294901760
  %v1034 = vsub.f32 %v119, %v1033
  %1035 = vmatmul.mubr.f32.gmra.mrb[0].mxu0 %v1034
  %v1036 = vpop.f32.mrb[0].mxu0
  %v1037 = vadd.f32 %v751, %v1036
  %v1038 = vpop.f32.mrb[0].mxu0
  %1039 = vmatprep.mubr.f32.mxu0 0.0
  %v1040 = vand.u32 %v122, 4294901760
  %v1041 = vsub.f32 %v122, %v1040
  %1042 = vmatmul.mubr.f32.gmra.mrb[0].mxu0 %v1041
  %v1043 = vpop.f32.mrb[0].mxu0
  %v1044 = vadd.f32 %v757, %v1043
  %v1045 = vpop.f32.mrb[0].mxu0
  %1046 = vmatprep.mubr.f32.mxu0 0.0
  %v1047 = vand.u32 %v125, 4294901760
  %v1048 = vsub.f32 %v125, %v1047
  %1049 = vmatmul.mubr.f32.gmra.mrb[0].mxu0 %v1048
  %v1050 = vpop.f32.mrb[0].mxu0
  %v1051 = vadd.f32 %v763, %v1050
  %v1052 = vpop.f32.mrb[0].mxu0
  %1053 = vmatprep.mubr.f32.mxu0 0.0
  %v1054 = vand.u32 %v128, 4294901760
  %v1055 = vsub.f32 %v128, %v1054
  %1056 = vmatmul.mubr.f32.gmra.mrb[0].mxu0 %v1055
  %v1057 = vpop.f32.mrb[0].mxu0
  %v1058 = vadd.f32 %v769, %v1057
  %v1059 = vpop.f32.mrb[0].mxu0
  %1060 = vmatprep.mubr.f32.mxu0 0.0
  %v1061 = vand.u32 %v131, 4294901760
  %v1062 = vsub.f32 %v131, %v1061
  %1063 = vmatmul.mubr.f32.gmra.mrb[0].mxu0 %v1062
  %v1064 = vpop.f32.mrb[0].mxu0
  %v1065 = vadd.f32 %v775, %v1064
  %v1066 = vpop.f32.mrb[0].mxu0
  %1067 = vmatprep.mubr.f32.mxu0 0.0
  %v1068 = vand.u32 %v134, 4294901760
  %v1069 = vsub.f32 %v134, %v1068
  %1070 = vmatmul.mubr.f32.gmra.mrb[0].mxu0 %v1069
  %v1071 = vpop.f32.mrb[0].mxu0
  %v1072 = vadd.f32 %v781, %v1071
  %v1073 = vpop.f32.mrb[0].mxu0
  %1074 = vmatprep.mubr.f32.mxu0 0.0
  %v1075 = vand.u32 %v137, 4294901760
  %v1076 = vsub.f32 %v137, %v1075
  %1077 = vmatmul.mubr.f32.gmra.mrb[0].mxu0 %v1076
  %v1078 = vpop.f32.mrb[0].mxu0
  %v1079 = vadd.f32 %v787, %v1078
  %v1080 = vpop.f32.mrb[0].mxu0
  %1081 = vmatprep.mubr.f32.mxu0 0.0
  %v1082 = vand.u32 %v140, 4294901760
  %v1083 = vsub.f32 %v140, %v1082
  %1084 = vmatmul.mubr.f32.gmra.mrb[0].mxu0 %v1083
  %v1085 = vpop.f32.mrb[0].mxu0
  %v1086 = vadd.f32 %v793, %v1085
  %v1087 = vpop.f32.mrb[0].mxu0
  %1088 = vmatprep.mubr.f32.mxu0 0.0
  %v1089 = vand.u32 %v143, 4294901760
  %v1090 = vsub.f32 %v143, %v1089
  %1091 = vmatmul.mubr.f32.gmra.mrb[0].mxu0 %v1090
  %v1092 = vpop.f32.mrb[0].mxu0
  %v1093 = vadd.f32 %v799, %v1092
  %v1094 = vpop.f32.mrb[0].mxu0
  %1095 = vmatprep.mubr.f32.mxu0 0.0
  %v1096 = vand.u32 %v146, 4294901760
  %v1097 = vsub.f32 %v146, %v1096
  %1098 = vmatmul.mubr.f32.gmra.mrb[0].mxu0 %v1097
  %v1099 = vpop.f32.mrb[0].mxu0
  %v1100 = vadd.f32 %v805, %v1099
  %v1101 = vpop.f32.mrb[0].mxu0
  %1102 = vmatprep.mubr.f32.mxu0 0.0
  %v1103 = vand.u32 %v149, 4294901760
  %v1104 = vsub.f32 %v149, %v1103
  %1105 = vmatmul.mubr.f32.gmra.mrb[0].mxu0 %v1104
  %v1106 = vpop.f32.mrb[0].mxu0
  %v1107 = vadd.f32 %v811, %v1106
  %v1108 = vpop.f32.mrb[0].mxu0
  %1109 = vmatprep.mubr.f32.mxu0 0.0
  %v1110 = vand.u32 %v152, 4294901760
  %v1111 = vsub.f32 %v152, %v1110
  %1112 = vmatmul.mubr.f32.gmra.mrb[0].mxu0 %v1111
  %v1113 = vpop.f32.mrb[0].mxu0
  %v1114 = vadd.f32 %v817, %v1113
  %v1115 = vpop.f32.mrb[0].mxu0
  %1116 = vdwg.mxu0
  %1117 = vmatprep.subr.mxu0 0.0
  %v1118 = vand.u32 %v46, 4294901760
  %1119 = vmatpush1.msra.mxu0 %v1118
  %1120 = vmatprep.subr.mxu0 0.0
  %v1121 = vand.u32 %v47, 4294901760
  %1122 = vmatpush1.msra.mxu0 %v1121
  %1123 = vmatprep.subr.mxu0 0.0
  %v1124 = vand.u32 %v48, 4294901760
  %1125 = vmatpush1.msra.mxu0 %v1124
  %1126 = vmatprep.subr.mxu0 0.0
  %v1127 = vand.u32 %v49, 4294901760
  %1128 = vmatpush1.msra.mxu0 %v1127
  %1129 = vmatprep.subr.mxu0 0.0
  %1130 = vmatpush1.msra.mxu0 0.0
  %1131 = vmatprep.subr.mxu0 0.0
  %1132 = vmatpush1.msra.mxu0 0.0
  %1133 = vmatprep.subr.mxu0 0.0
  %1134 = vmatpush1.msra.mxu0 0.0
  %1135 = vmatprep.subr.mxu0 0.0
  %1136 = vmatpush1.msra.mxu0 0.0
  %1137 = vmatprep.subr.mxu0 0.0
  %1138 = vmatpush1.msra.mxu0 0.0
  %1139 = vmatprep.subr.mxu0 0.0
  %1140 = vmatpush1.msra.mxu0 0.0
  %1141 = vmatprep.subr.mxu0 0.0
  %1142 = vmatpush1.msra.mxu0 0.0
  %1143 = vmatprep.subr.mxu0 0.0
  %1144 = vmatpush1.msra.mxu0 0.0
  %1145 = vmatprep.subr.mxu0 0.0
  %1146 = vmatpush1.msra.mxu0 0.0
  %1147 = vmatprep.subr.mxu0 0.0
  %1148 = vmatpush1.msra.mxu0 0.0
  %1149 = vmatprep.subr.mxu0 0.0
  %1150 = vmatpush1.msra.mxu0 0.0
  %1151 = vmatprep.subr.mxu0 0.0
  %1152 = vmatpush1.msra.mxu0 0.0
  %1153 = vmatprep.subr.mxu0 0.0
  %1154 = vmatpush1.msra.mxu0 0.0
  %1155 = vmatprep.subr.mxu0 0.0
  %1156 = vmatpush1.msra.mxu0 0.0
  %1157 = vmatprep.subr.mxu0 0.0
  %1158 = vmatpush1.msra.mxu0 0.0
  %1159 = vmatprep.subr.mxu0 0.0
  %1160 = vmatpush1.msra.mxu0 0.0
  %1161 = vmatprep.subr.mxu0 0.0
  %1162 = vmatpush1.msra.mxu0 0.0
  %1163 = vmatprep.subr.mxu0 0.0
  %1164 = vmatpush1.msra.mxu0 0.0
  %1165 = vmatprep.subr.mxu0 0.0
  %1166 = vmatpush1.msra.mxu0 0.0
  %1167 = vmatprep.subr.mxu0 0.0
  %1168 = vmatpush1.msra.mxu0 0.0
  %1169 = vmatprep.subr.mxu0 0.0
  %1170 = vmatpush1.msra.mxu0 0.0
  %1171 = vmatprep.subr.mxu0 0.0
  %1172 = vmatpush1.msra.mxu0 0.0
  %1173 = vmatprep.subr.mxu0 0.0
  %1174 = vmatpush1.msra.mxu0 0.0
  %1175 = vmatprep.subr.mxu0 0.0
  %1176 = vmatpush1.msra.mxu0 0.0
  %1177 = vmatprep.subr.mxu0 0.0
  %1178 = vmatpush1.msra.mxu0 0.0
  %1179 = vmatprep.subr.mxu0 0.0
  %1180 = vmatpush1.msra.mxu0 0.0
  %1181 = vmatprep.subr.mxu0 0.0
  %1182 = vmatpush1.msra.mxu0 0.0
  %1183 = vmatprep.subr.mxu0 0.0
  %1184 = vmatpush1.msra.mxu0 0.0
  %1185 = vmatprep.mubr.f32.mxu0 0.0
  %v1186 = vand.u32 %v59, 4294901760
  %v1187 = vsub.f32 %v59, %v1186
  %v1188 = vand.u32 %v1187, 4294901760
  %1189 = vmatmul.mubr.f32.gmra.mrb[0].mxu0 %v1188
  %v1190 = vpop.f32.mrb[0].mxu0
  %v1191 = vadd.f32 %v897, %v1190
  %v1192 = vpop.f32.mrb[0].mxu0
  %1193 = vmatprep.mubr.f32.mxu0 0.0
  %v1194 = vand.u32 %v62, 4294901760
  %v1195 = vsub.f32 %v62, %v1194
  %v1196 = vand.u32 %v1195, 4294901760
  %1197 = vmatmul.mubr.f32.gmra.mrb[0].mxu0 %v1196
  %v1198 = vpop.f32.mrb[0].mxu0
  %v1199 = vadd.f32 %v904, %v1198
  %v1200 = vpop.f32.mrb[0].mxu0
  %1201 = vmatprep.mubr.f32.mxu0 0.0
  %v1202 = vand.u32 %v65, 4294901760
  %v1203 = vsub.f32 %v65, %v1202
  %v1204 = vand.u32 %v1203, 4294901760
  %1205 = vmatmul.mubr.f32.gmra.mrb[0].mxu0 %v1204
  %v1206 = vpop.f32.mrb[0].mxu0
  %v1207 = vadd.f32 %v911, %v1206
  %v1208 = vpop.f32.mrb[0].mxu0
  %1209 = vmatprep.mubr.f32.mxu0 0.0
  %v1210 = vand.u32 %v68, 4294901760
  %v1211 = vsub.f32 %v68, %v1210
  %v1212 = vand.u32 %v1211, 4294901760
  %1213 = vmatmul.mubr.f32.gmra.mrb[0].mxu0 %v1212
  %v1214 = vpop.f32.mrb[0].mxu0
  %v1215 = vadd.f32 %v918, %v1214
  %v1216 = vpop.f32.mrb[0].mxu0
  %1217 = vmatprep.mubr.f32.mxu0 0.0
  %v1218 = vand.u32 %v71, 4294901760
  %v1219 = vsub.f32 %v71, %v1218
  %v1220 = vand.u32 %v1219, 4294901760
  %1221 = vmatmul.mubr.f32.gmra.mrb[0].mxu0 %v1220
  %v1222 = vpop.f32.mrb[0].mxu0
  %v1223 = vadd.f32 %v925, %v1222
  %v1224 = vpop.f32.mrb[0].mxu0
  %1225 = vmatprep.mubr.f32.mxu0 0.0
  %v1226 = vand.u32 %v74, 4294901760
  %v1227 = vsub.f32 %v74, %v1226
  %v1228 = vand.u32 %v1227, 4294901760
  %1229 = vmatmul.mubr.f32.gmra.mrb[0].mxu0 %v1228
  %v1230 = vpop.f32.mrb[0].mxu0
  %v1231 = vadd.f32 %v932, %v1230
  %v1232 = vpop.f32.mrb[0].mxu0
  %1233 = vmatprep.mubr.f32.mxu0 0.0
  %v1234 = vand.u32 %v77, 4294901760
  %v1235 = vsub.f32 %v77, %v1234
  %v1236 = vand.u32 %v1235, 4294901760
  %1237 = vmatmul.mubr.f32.gmra.mrb[0].mxu0 %v1236
  %v1238 = vpop.f32.mrb[0].mxu0
  %v1239 = vadd.f32 %v939, %v1238
  %v1240 = vpop.f32.mrb[0].mxu0
  %1241 = vmatprep.mubr.f32.mxu0 0.0
  %v1242 = vand.u32 %v80, 4294901760
  %v1243 = vsub.f32 %v80, %v1242
  %v1244 = vand.u32 %v1243, 4294901760
  %1245 = vmatmul.mubr.f32.gmra.mrb[0].mxu0 %v1244
  %v1246 = vpop.f32.mrb[0].mxu0
  %v1247 = vadd.f32 %v946, %v1246
  %v1248 = vpop.f32.mrb[0].mxu0
  %1249 = vmatprep.mubr.f32.mxu0 0.0
  %v1250 = vand.u32 %v83, 4294901760
  %v1251 = vsub.f32 %v83, %v1250
  %v1252 = vand.u32 %v1251, 4294901760
  %1253 = vmatmul.mubr.f32.gmra.mrb[0].mxu0 %v1252
  %v1254 = vpop.f32.mrb[0].mxu0
  %v1255 = vadd.f32 %v953, %v1254
  %v1256 = vpop.f32.mrb[0].mxu0
  %1257 = vmatprep.mubr.f32.mxu0 0.0
  %v1258 = vand.u32 %v86, 4294901760
  %v1259 = vsub.f32 %v86, %v1258
  %v1260 = vand.u32 %v1259, 4294901760
  %1261 = vmatmul.mubr.f32.gmra.mrb[0].mxu0 %v1260
  %v1262 = vpop.f32.mrb[0].mxu0
  %v1263 = vadd.f32 %v960, %v1262
  %v1264 = vpop.f32.mrb[0].mxu0
  %1265 = vmatprep.mubr.f32.mxu0 0.0
  %v1266 = vand.u32 %v89, 4294901760
  %v1267 = vsub.f32 %v89, %v1266
  %v1268 = vand.u32 %v1267, 4294901760
  %1269 = vmatmul.mubr.f32.gmra.mrb[0].mxu0 %v1268
  %v1270 = vpop.f32.mrb[0].mxu0
  %v1271 = vadd.f32 %v967, %v1270
  %v1272 = vpop.f32.mrb[0].mxu0
  %1273 = vmatprep.mubr.f32.mxu0 0.0
  %v1274 = vand.u32 %v92, 4294901760
  %v1275 = vsub.f32 %v92, %v1274
  %v1276 = vand.u32 %v1275, 4294901760
  %1277 = vmatmul.mubr.f32.gmra.mrb[0].mxu0 %v1276
  %v1278 = vpop.f32.mrb[0].mxu0
  %v1279 = vadd.f32 %v974, %v1278
  %v1280 = vpop.f32.mrb[0].mxu0
  %1281 = vmatprep.mubr.f32.mxu0 0.0
  %v1282 = vand.u32 %v95, 4294901760
  %v1283 = vsub.f32 %v95, %v1282
  %v1284 = vand.u32 %v1283, 4294901760
  %1285 = vmatmul.mubr.f32.gmra.mrb[0].mxu0 %v1284
  %v1286 = vpop.f32.mrb[0].mxu0
  %v1287 = vadd.f32 %v981, %v1286
  %v1288 = vpop.f32.mrb[0].mxu0
  %1289 = vmatprep.mubr.f32.mxu0 0.0
  %v1290 = vand.u32 %v98, 4294901760
  %v1291 = vsub.f32 %v98, %v1290
  %v1292 = vand.u32 %v1291, 4294901760
  %1293 = vmatmul.mubr.f32.gmra.mrb[0].mxu0 %v1292
  %v1294 = vpop.f32.mrb[0].mxu0
  %v1295 = vadd.f32 %v988, %v1294
  %v1296 = vpop.f32.mrb[0].mxu0
  %1297 = vmatprep.mubr.f32.mxu0 0.0
  %v1298 = vand.u32 %v101, 4294901760
  %v1299 = vsub.f32 %v101, %v1298
  %v1300 = vand.u32 %v1299, 4294901760
  %1301 = vmatmul.mubr.f32.gmra.mrb[0].mxu0 %v1300
  %v1302 = vpop.f32.mrb[0].mxu0
  %v1303 = vadd.f32 %v995, %v1302
  %v1304 = vpop.f32.mrb[0].mxu0
  %1305 = vmatprep.mubr.f32.mxu0 0.0
  %v1306 = vand.u32 %v104, 4294901760
  %v1307 = vsub.f32 %v104, %v1306
  %v1308 = vand.u32 %v1307, 4294901760
  %1309 = vmatmul.mubr.f32.gmra.mrb[0].mxu0 %v1308
  %v1310 = vpop.f32.mrb[0].mxu0
  %v1311 = vadd.f32 %v1002, %v1310
  %v1312 = vpop.f32.mrb[0].mxu0
  %1313 = vmatprep.mubr.f32.mxu0 0.0
  %v1314 = vand.u32 %v107, 4294901760
  %v1315 = vsub.f32 %v107, %v1314
  %v1316 = vand.u32 %v1315, 4294901760
  %1317 = vmatmul.mubr.f32.gmra.mrb[0].mxu0 %v1316
  %v1318 = vpop.f32.mrb[0].mxu0
  %v1319 = vadd.f32 %v1009, %v1318
  %v1320 = vpop.f32.mrb[0].mxu0
  %1321 = vmatprep.mubr.f32.mxu0 0.0
  %v1322 = vand.u32 %v110, 4294901760
  %v1323 = vsub.f32 %v110, %v1322
  %v1324 = vand.u32 %v1323, 4294901760
  %1325 = vmatmul.mubr.f32.gmra.mrb[0].mxu0 %v1324
  %v1326 = vpop.f32.mrb[0].mxu0
  %v1327 = vadd.f32 %v1016, %v1326
  %v1328 = vpop.f32.mrb[0].mxu0
  %1329 = vmatprep.mubr.f32.mxu0 0.0
  %v1330 = vand.u32 %v113, 4294901760
  %v1331 = vsub.f32 %v113, %v1330
  %v1332 = vand.u32 %v1331, 4294901760
  %1333 = vmatmul.mubr.f32.gmra.mrb[0].mxu0 %v1332
  %v1334 = vpop.f32.mrb[0].mxu0
  %v1335 = vadd.f32 %v1023, %v1334
  %v1336 = vpop.f32.mrb[0].mxu0
  %1337 = vmatprep.mubr.f32.mxu0 0.0
  %v1338 = vand.u32 %v116, 4294901760
  %v1339 = vsub.f32 %v116, %v1338
  %v1340 = vand.u32 %v1339, 4294901760
  %1341 = vmatmul.mubr.f32.gmra.mrb[0].mxu0 %v1340
  %v1342 = vpop.f32.mrb[0].mxu0
  %v1343 = vadd.f32 %v1030, %v1342
  %v1344 = vpop.f32.mrb[0].mxu0
  %1345 = vmatprep.mubr.f32.mxu0 0.0
  %v1346 = vand.u32 %v119, 4294901760
  %v1347 = vsub.f32 %v119, %v1346
  %v1348 = vand.u32 %v1347, 4294901760
  %1349 = vmatmul.mubr.f32.gmra.mrb[0].mxu0 %v1348
  %v1350 = vpop.f32.mrb[0].mxu0
  %v1351 = vadd.f32 %v1037, %v1350
  %v1352 = vpop.f32.mrb[0].mxu0
  %1353 = vmatprep.mubr.f32.mxu0 0.0
  %v1354 = vand.u32 %v122, 4294901760
  %v1355 = vsub.f32 %v122, %v1354
  %v1356 = vand.u32 %v1355, 4294901760
  %1357 = vmatmul.mubr.f32.gmra.mrb[0].mxu0 %v1356
  %v1358 = vpop.f32.mrb[0].mxu0
  %v1359 = vadd.f32 %v1044, %v1358
  %v1360 = vpop.f32.mrb[0].mxu0
  %1361 = vmatprep.mubr.f32.mxu0 0.0
  %v1362 = vand.u32 %v125, 4294901760
  %v1363 = vsub.f32 %v125, %v1362
  %v1364 = vand.u32 %v1363, 4294901760
  %1365 = vmatmul.mubr.f32.gmra.mrb[0].mxu0 %v1364
  %v1366 = vpop.f32.mrb[0].mxu0
  %v1367 = vadd.f32 %v1051, %v1366
  %v1368 = vpop.f32.mrb[0].mxu0
  %1369 = vmatprep.mubr.f32.mxu0 0.0
  %v1370 = vand.u32 %v128, 4294901760
  %v1371 = vsub.f32 %v128, %v1370
  %v1372 = vand.u32 %v1371, 4294901760
  %1373 = vmatmul.mubr.f32.gmra.mrb[0].mxu0 %v1372
  %v1374 = vpop.f32.mrb[0].mxu0
  %v1375 = vadd.f32 %v1058, %v1374
  %v1376 = vpop.f32.mrb[0].mxu0
  %1377 = vmatprep.mubr.f32.mxu0 0.0
  %v1378 = vand.u32 %v131, 4294901760
  %v1379 = vsub.f32 %v131, %v1378
  %v1380 = vand.u32 %v1379, 4294901760
  %1381 = vmatmul.mubr.f32.gmra.mrb[0].mxu0 %v1380
  %v1382 = vpop.f32.mrb[0].mxu0
  %v1383 = vadd.f32 %v1065, %v1382
  %v1384 = vpop.f32.mrb[0].mxu0
  %1385 = vmatprep.mubr.f32.mxu0 0.0
  %v1386 = vand.u32 %v134, 4294901760
  %v1387 = vsub.f32 %v134, %v1386
  %v1388 = vand.u32 %v1387, 4294901760
  %1389 = vmatmul.mubr.f32.gmra.mrb[0].mxu0 %v1388
  %v1390 = vpop.f32.mrb[0].mxu0
  %v1391 = vadd.f32 %v1072, %v1390
  %v1392 = vpop.f32.mrb[0].mxu0
  %1393 = vmatprep.mubr.f32.mxu0 0.0
  %v1394 = vand.u32 %v137, 4294901760
  %v1395 = vsub.f32 %v137, %v1394
  %v1396 = vand.u32 %v1395, 4294901760
  %1397 = vmatmul.mubr.f32.gmra.mrb[0].mxu0 %v1396
  %v1398 = vpop.f32.mrb[0].mxu0
  %v1399 = vadd.f32 %v1079, %v1398
  %v1400 = vpop.f32.mrb[0].mxu0
  %1401 = vmatprep.mubr.f32.mxu0 0.0
  %v1402 = vand.u32 %v140, 4294901760
  %v1403 = vsub.f32 %v140, %v1402
  %v1404 = vand.u32 %v1403, 4294901760
  %1405 = vmatmul.mubr.f32.gmra.mrb[0].mxu0 %v1404
  %v1406 = vpop.f32.mrb[0].mxu0
  %v1407 = vadd.f32 %v1086, %v1406
  %v1408 = vpop.f32.mrb[0].mxu0
  %1409 = vmatprep.mubr.f32.mxu0 0.0
  %v1410 = vand.u32 %v143, 4294901760
  %v1411 = vsub.f32 %v143, %v1410
  %v1412 = vand.u32 %v1411, 4294901760
  %1413 = vmatmul.mubr.f32.gmra.mrb[0].mxu0 %v1412
  %v1414 = vpop.f32.mrb[0].mxu0
  %v1415 = vadd.f32 %v1093, %v1414
  %v1416 = vpop.f32.mrb[0].mxu0
  %1417 = vmatprep.mubr.f32.mxu0 0.0
  %v1418 = vand.u32 %v146, 4294901760
  %v1419 = vsub.f32 %v146, %v1418
  %v1420 = vand.u32 %v1419, 4294901760
  %1421 = vmatmul.mubr.f32.gmra.mrb[0].mxu0 %v1420
  %v1422 = vpop.f32.mrb[0].mxu0
  %v1423 = vadd.f32 %v1100, %v1422
  %v1424 = vpop.f32.mrb[0].mxu0
  %1425 = vmatprep.mubr.f32.mxu0 0.0
  %v1426 = vand.u32 %v149, 4294901760
  %v1427 = vsub.f32 %v149, %v1426
  %v1428 = vand.u32 %v1427, 4294901760
  %1429 = vmatmul.mubr.f32.gmra.mrb[0].mxu0 %v1428
  %v1430 = vpop.f32.mrb[0].mxu0
  %v1431 = vadd.f32 %v1107, %v1430
  %v1432 = vpop.f32.mrb[0].mxu0
  %1433 = vmatprep.mubr.f32.mxu0 0.0
  %v1434 = vand.u32 %v152, 4294901760
  %v1435 = vsub.f32 %v152, %v1434
  %v1436 = vand.u32 %v1435, 4294901760
  %1437 = vmatmul.mubr.f32.gmra.mrb[0].mxu0 %v1436
  %v1438 = vpop.f32.mrb[0].mxu0
  %v1439 = vadd.f32 %v1114, %v1438
  %v1440 = vpop.f32.mrb[0].mxu0
  %1441 = vdwg.mxu0
  %1442 = vmatprep.subr.mxu0 0.0
  %v1443 = vand.u32 %v46, 4294901760
  %v1444 = vsub.f32 %v46, %v1443
  %v1445 = vand.u32 %v1444, 4294901760
  %1446 = vmatpush1.msra.mxu0 %v1445
  %1447 = vmatprep.subr.mxu0 0.0
  %v1448 = vand.u32 %v47, 4294901760
  %v1449 = vsub.f32 %v47, %v1448
  %v1450 = vand.u32 %v1449, 4294901760
  %1451 = vmatpush1.msra.mxu0 %v1450
  %1452 = vmatprep.subr.mxu0 0.0
  %v1453 = vand.u32 %v48, 4294901760
  %v1454 = vsub.f32 %v48, %v1453
  %v1455 = vand.u32 %v1454, 4294901760
  %1456 = vmatpush1.msra.mxu0 %v1455
  %1457 = vmatprep.subr.mxu0 0.0
  %v1458 = vand.u32 %v49, 4294901760
  %v1459 = vsub.f32 %v49, %v1458
  %v1460 = vand.u32 %v1459, 4294901760
  %1461 = vmatpush1.msra.mxu0 %v1460
  %1462 = vmatprep.subr.mxu0 0.0
  %1463 = vmatpush1.msra.mxu0 0.0
  %1464 = vmatprep.subr.mxu0 0.0
  %1465 = vmatpush1.msra.mxu0 0.0
  %1466 = vmatprep.subr.mxu0 0.0
  %1467 = vmatpush1.msra.mxu0 0.0
  %1468 = vmatprep.subr.mxu0 0.0
  %1469 = vmatpush1.msra.mxu0 0.0
  %1470 = vmatprep.subr.mxu0 0.0
  %1471 = vmatpush1.msra.mxu0 0.0
  %1472 = vmatprep.subr.mxu0 0.0
  %1473 = vmatpush1.msra.mxu0 0.0
  %1474 = vmatprep.subr.mxu0 0.0
  %1475 = vmatpush1.msra.mxu0 0.0
  %1476 = vmatprep.subr.mxu0 0.0
  %1477 = vmatpush1.msra.mxu0 0.0
  %1478 = vmatprep.subr.mxu0 0.0
  %1479 = vmatpush1.msra.mxu0 0.0
  %1480 = vmatprep.subr.mxu0 0.0
  %1481 = vmatpush1.msra.mxu0 0.0
  %1482 = vmatprep.subr.mxu0 0.0
  %1483 = vmatpush1.msra.mxu0 0.0
  %1484 = vmatprep.subr.mxu0 0.0
  %1485 = vmatpush1.msra.mxu0 0.0
  %1486 = vmatprep.subr.mxu0 0.0
  %1487 = vmatpush1.msra.mxu0 0.0
  %1488 = vmatprep.subr.mxu0 0.0
  %1489 = vmatpush1.msra.mxu0 0.0
  %1490 = vmatprep.subr.mxu0 0.0
  %1491 = vmatpush1.msra.mxu0 0.0
  %1492 = vmatprep.subr.mxu0 0.0
  %1493 = vmatpush1.msra.mxu0 0.0
  %1494 = vmatprep.subr.mxu0 0.0
  %1495 = vmatpush1.msra.mxu0 0.0
  %1496 = vmatprep.subr.mxu0 0.0
  %1497 = vmatpush1.msra.mxu0 0.0
  %1498 = vmatprep.subr.mxu0 0.0
  %1499 = vmatpush1.msra.mxu0 0.0
  %1500 = vmatprep.subr.mxu0 0.0
  %1501 = vmatpush1.msra.mxu0 0.0
  %1502 = vmatprep.subr.mxu0 0.0
  %1503 = vmatpush1.msra.mxu0 0.0
  %1504 = vmatprep.subr.mxu0 0.0
  %1505 = vmatpush1.msra.mxu0 0.0
  %1506 = vmatprep.subr.mxu0 0.0
  %1507 = vmatpush1.msra.mxu0 0.0
  %1508 = vmatprep.subr.mxu0 0.0
  %1509 = vmatpush1.msra.mxu0 0.0
  %1510 = vmatprep.subr.mxu0 0.0
  %1511 = vmatpush1.msra.mxu0 0.0
  %1512 = vmatprep.subr.mxu0 0.0
  %1513 = vmatpush1.msra.mxu0 0.0
  %1514 = vmatprep.subr.mxu0 0.0
  %1515 = vmatpush1.msra.mxu0 0.0
  %1516 = vmatprep.subr.mxu0 0.0
  %1517 = vmatpush1.msra.mxu0 0.0
  %1518 = vmatprep.mubr.f32.mxu0 0.0
  %v1519 = vand.u32 %v59, 4294901760
  %1520 = vmatmul.mubr.f32.gmra.mrb[0].mxu0 %v1519
  %v1521 = vpop.f32.mrb[0].mxu0
  %v1522 = vadd.f32 %v1191, %v1521
  %v1523 = vpop.f32.mrb[0].mxu0
  %1524 = vmatprep.mubr.f32.mxu0 0.0
  %v1525 = vand.u32 %v62, 4294901760
  %1526 = vmatmul.mubr.f32.gmra.mrb[0].mxu0 %v1525
  %v1527 = vpop.f32.mrb[0].mxu0
  %v1528 = vadd.f32 %v1199, %v1527
  %v1529 = vpop.f32.mrb[0].mxu0
  %1530 = vmatprep.mubr.f32.mxu0 0.0
  %v1531 = vand.u32 %v65, 4294901760
  %1532 = vmatmul.mubr.f32.gmra.mrb[0].mxu0 %v1531
  %v1533 = vpop.f32.mrb[0].mxu0
  %v1534 = vadd.f32 %v1207, %v1533
  %v1535 = vpop.f32.mrb[0].mxu0
  %1536 = vmatprep.mubr.f32.mxu0 0.0
  %v1537 = vand.u32 %v68, 4294901760
  %1538 = vmatmul.mubr.f32.gmra.mrb[0].mxu0 %v1537
  %v1539 = vpop.f32.mrb[0].mxu0
  %v1540 = vadd.f32 %v1215, %v1539
  %v1541 = vpop.f32.mrb[0].mxu0
  %1542 = vmatprep.mubr.f32.mxu0 0.0
  %v1543 = vand.u32 %v71, 4294901760
  %1544 = vmatmul.mubr.f32.gmra.mrb[0].mxu0 %v1543
  %v1545 = vpop.f32.mrb[0].mxu0
  %v1546 = vadd.f32 %v1223, %v1545
  %v1547 = vpop.f32.mrb[0].mxu0
  %1548 = vmatprep.mubr.f32.mxu0 0.0
  %v1549 = vand.u32 %v74, 4294901760
  %1550 = vmatmul.mubr.f32.gmra.mrb[0].mxu0 %v1549
  %v1551 = vpop.f32.mrb[0].mxu0
  %v1552 = vadd.f32 %v1231, %v1551
  %v1553 = vpop.f32.mrb[0].mxu0
  %1554 = vmatprep.mubr.f32.mxu0 0.0
  %v1555 = vand.u32 %v77, 4294901760
  %1556 = vmatmul.mubr.f32.gmra.mrb[0].mxu0 %v1555
  %v1557 = vpop.f32.mrb[0].mxu0
  %v1558 = vadd.f32 %v1239, %v1557
  %v1559 = vpop.f32.mrb[0].mxu0
  %1560 = vmatprep.mubr.f32.mxu0 0.0
  %v1561 = vand.u32 %v80, 4294901760
  %1562 = vmatmul.mubr.f32.gmra.mrb[0].mxu0 %v1561
  %v1563 = vpop.f32.mrb[0].mxu0
  %v1564 = vadd.f32 %v1247, %v1563
  %v1565 = vpop.f32.mrb[0].mxu0
  %1566 = vmatprep.mubr.f32.mxu0 0.0
  %v1567 = vand.u32 %v83, 4294901760
  %1568 = vmatmul.mubr.f32.gmra.mrb[0].mxu0 %v1567
  %v1569 = vpop.f32.mrb[0].mxu0
  %v1570 = vadd.f32 %v1255, %v1569
  %v1571 = vpop.f32.mrb[0].mxu0
  %1572 = vmatprep.mubr.f32.mxu0 0.0
  %v1573 = vand.u32 %v86, 4294901760
  %1574 = vmatmul.mubr.f32.gmra.mrb[0].mxu0 %v1573
  %v1575 = vpop.f32.mrb[0].mxu0
  %v1576 = vadd.f32 %v1263, %v1575
  %v1577 = vpop.f32.mrb[0].mxu0
  %1578 = vmatprep.mubr.f32.mxu0 0.0
  %v1579 = vand.u32 %v89, 4294901760
  %1580 = vmatmul.mubr.f32.gmra.mrb[0].mxu0 %v1579
  %v1581 = vpop.f32.mrb[0].mxu0
  %v1582 = vadd.f32 %v1271, %v1581
  %v1583 = vpop.f32.mrb[0].mxu0
  %1584 = vmatprep.mubr.f32.mxu0 0.0
  %v1585 = vand.u32 %v92, 4294901760
  %1586 = vmatmul.mubr.f32.gmra.mrb[0].mxu0 %v1585
  %v1587 = vpop.f32.mrb[0].mxu0
  %v1588 = vadd.f32 %v1279, %v1587
  %v1589 = vpop.f32.mrb[0].mxu0
  %1590 = vmatprep.mubr.f32.mxu0 0.0
  %v1591 = vand.u32 %v95, 4294901760
  %1592 = vmatmul.mubr.f32.gmra.mrb[0].mxu0 %v1591
  %v1593 = vpop.f32.mrb[0].mxu0
  %v1594 = vadd.f32 %v1287, %v1593
  %v1595 = vpop.f32.mrb[0].mxu0
  %1596 = vmatprep.mubr.f32.mxu0 0.0
  %v1597 = vand.u32 %v98, 4294901760
  %1598 = vmatmul.mubr.f32.gmra.mrb[0].mxu0 %v1597
  %v1599 = vpop.f32.mrb[0].mxu0
  %v1600 = vadd.f32 %v1295, %v1599
  %v1601 = vpop.f32.mrb[0].mxu0
  %1602 = vmatprep.mubr.f32.mxu0 0.0
  %v1603 = vand.u32 %v101, 4294901760
  %1604 = vmatmul.mubr.f32.gmra.mrb[0].mxu0 %v1603
  %v1605 = vpop.f32.mrb[0].mxu0
  %v1606 = vadd.f32 %v1303, %v1605
  %v1607 = vpop.f32.mrb[0].mxu0
  %1608 = vmatprep.mubr.f32.mxu0 0.0
  %v1609 = vand.u32 %v104, 4294901760
  %1610 = vmatmul.mubr.f32.gmra.mrb[0].mxu0 %v1609
  %v1611 = vpop.f32.mrb[0].mxu0
  %v1612 = vadd.f32 %v1311, %v1611
  %v1613 = vpop.f32.mrb[0].mxu0
  %1614 = vmatprep.mubr.f32.mxu0 0.0
  %v1615 = vand.u32 %v107, 4294901760
  %1616 = vmatmul.mubr.f32.gmra.mrb[0].mxu0 %v1615
  %v1617 = vpop.f32.mrb[0].mxu0
  %v1618 = vadd.f32 %v1319, %v1617
  %v1619 = vpop.f32.mrb[0].mxu0
  %1620 = vmatprep.mubr.f32.mxu0 0.0
  %v1621 = vand.u32 %v110, 4294901760
  %1622 = vmatmul.mubr.f32.gmra.mrb[0].mxu0 %v1621
  %v1623 = vpop.f32.mrb[0].mxu0
  %v1624 = vadd.f32 %v1327, %v1623
  %v1625 = vpop.f32.mrb[0].mxu0
  %1626 = vmatprep.mubr.f32.mxu0 0.0
  %v1627 = vand.u32 %v113, 4294901760
  %1628 = vmatmul.mubr.f32.gmra.mrb[0].mxu0 %v1627
  %v1629 = vpop.f32.mrb[0].mxu0
  %v1630 = vadd.f32 %v1335, %v1629
  %v1631 = vpop.f32.mrb[0].mxu0
  %1632 = vmatprep.mubr.f32.mxu0 0.0
  %v1633 = vand.u32 %v116, 4294901760
  %1634 = vmatmul.mubr.f32.gmra.mrb[0].mxu0 %v1633
  %v1635 = vpop.f32.mrb[0].mxu0
  %v1636 = vadd.f32 %v1343, %v1635
  %v1637 = vpop.f32.mrb[0].mxu0
  %1638 = vmatprep.mubr.f32.mxu0 0.0
  %v1639 = vand.u32 %v119, 4294901760
  %1640 = vmatmul.mubr.f32.gmra.mrb[0].mxu0 %v1639
  %v1641 = vpop.f32.mrb[0].mxu0
  %v1642 = vadd.f32 %v1351, %v1641
  %v1643 = vpop.f32.mrb[0].mxu0
  %1644 = vmatprep.mubr.f32.mxu0 0.0
  %v1645 = vand.u32 %v122, 4294901760
  %1646 = vmatmul.mubr.f32.gmra.mrb[0].mxu0 %v1645
  %v1647 = vpop.f32.mrb[0].mxu0
  %v1648 = vadd.f32 %v1359, %v1647
  %v1649 = vpop.f32.mrb[0].mxu0
  %1650 = vmatprep.mubr.f32.mxu0 0.0
  %v1651 = vand.u32 %v125, 4294901760
  %1652 = vmatmul.mubr.f32.gmra.mrb[0].mxu0 %v1651
  %v1653 = vpop.f32.mrb[0].mxu0
  %v1654 = vadd.f32 %v1367, %v1653
  %v1655 = vpop.f32.mrb[0].mxu0
  %1656 = vmatprep.mubr.f32.mxu0 0.0
  %v1657 = vand.u32 %v128, 4294901760
  %1658 = vmatmul.mubr.f32.gmra.mrb[0].mxu0 %v1657
  %v1659 = vpop.f32.mrb[0].mxu0
  %v1660 = vadd.f32 %v1375, %v1659
  %v1661 = vpop.f32.mrb[0].mxu0
  %1662 = vmatprep.mubr.f32.mxu0 0.0
  %v1663 = vand.u32 %v131, 4294901760
  %1664 = vmatmul.mubr.f32.gmra.mrb[0].mxu0 %v1663
  %v1665 = vpop.f32.mrb[0].mxu0
  %v1666 = vadd.f32 %v1383, %v1665
  %v1667 = vpop.f32.mrb[0].mxu0
  %1668 = vmatprep.mubr.f32.mxu0 0.0
  %v1669 = vand.u32 %v134, 4294901760
  %1670 = vmatmul.mubr.f32.gmra.mrb[0].mxu0 %v1669
  %v1671 = vpop.f32.mrb[0].mxu0
  %v1672 = vadd.f32 %v1391, %v1671
  %v1673 = vpop.f32.mrb[0].mxu0
  %1674 = vmatprep.mubr.f32.mxu0 0.0
  %v1675 = vand.u32 %v137, 4294901760
  %1676 = vmatmul.mubr.f32.gmra.mrb[0].mxu0 %v1675
  %v1677 = vpop.f32.mrb[0].mxu0
  %v1678 = vadd.f32 %v1399, %v1677
  %v1679 = vpop.f32.mrb[0].mxu0
  %1680 = vmatprep.mubr.f32.mxu0 0.0
  %v1681 = vand.u32 %v140, 4294901760
  %1682 = vmatmul.mubr.f32.gmra.mrb[0].mxu0 %v1681
  %v1683 = vpop.f32.mrb[0].mxu0
  %v1684 = vadd.f32 %v1407, %v1683
  %v1685 = vpop.f32.mrb[0].mxu0
  %1686 = vmatprep.mubr.f32.mxu0 0.0
  %v1687 = vand.u32 %v143, 4294901760
  %1688 = vmatmul.mubr.f32.gmra.mrb[0].mxu0 %v1687
  %v1689 = vpop.f32.mrb[0].mxu0
  %v1690 = vadd.f32 %v1415, %v1689
  %v1691 = vpop.f32.mrb[0].mxu0
  %1692 = vmatprep.mubr.f32.mxu0 0.0
  %v1693 = vand.u32 %v146, 4294901760
  %1694 = vmatmul.mubr.f32.gmra.mrb[0].mxu0 %v1693
  %v1695 = vpop.f32.mrb[0].mxu0
  %v1696 = vadd.f32 %v1423, %v1695
  %v1697 = vpop.f32.mrb[0].mxu0
  %1698 = vmatprep.mubr.f32.mxu0 0.0
  %v1699 = vand.u32 %v149, 4294901760
  %1700 = vmatmul.mubr.f32.gmra.mrb[0].mxu0 %v1699
  %v1701 = vpop.f32.mrb[0].mxu0
  %v1702 = vadd.f32 %v1431, %v1701
  %v1703 = vpop.f32.mrb[0].mxu0
  %1704 = vmatprep.mubr.f32.mxu0 0.0
  %v1705 = vand.u32 %v152, 4294901760
  %1706 = vmatmul.mubr.f32.gmra.mrb[0].mxu0 %v1705
  %v1707 = vpop.f32.mrb[0].mxu0
  %v1708 = vadd.f32 %v1439, %v1707
  %v1709 = vpop.f32.mrb[0].mxu0
  %1710 = vdwg.mxu0
  %1711 = vmatprep.subr.mxu0 0.0
  %v1712 = vand.u32 %v46, 4294901760
  %1713 = vmatpush1.msra.mxu0 %v1712
  %1714 = vmatprep.subr.mxu0 0.0
  %v1715 = vand.u32 %v47, 4294901760
  %1716 = vmatpush1.msra.mxu0 %v1715
  %1717 = vmatprep.subr.mxu0 0.0
  %v1718 = vand.u32 %v48, 4294901760
  %1719 = vmatpush1.msra.mxu0 %v1718
  %1720 = vmatprep.subr.mxu0 0.0
  %v1721 = vand.u32 %v49, 4294901760
  %1722 = vmatpush1.msra.mxu0 %v1721
  %1723 = vmatprep.subr.mxu0 0.0
  %1724 = vmatpush1.msra.mxu0 0.0
  %1725 = vmatprep.subr.mxu0 0.0
  %1726 = vmatpush1.msra.mxu0 0.0
  %1727 = vmatprep.subr.mxu0 0.0
  %1728 = vmatpush1.msra.mxu0 0.0
  %1729 = vmatprep.subr.mxu0 0.0
  %1730 = vmatpush1.msra.mxu0 0.0
  %1731 = vmatprep.subr.mxu0 0.0
  %1732 = vmatpush1.msra.mxu0 0.0
  %1733 = vmatprep.subr.mxu0 0.0
  %1734 = vmatpush1.msra.mxu0 0.0
  %1735 = vmatprep.subr.mxu0 0.0
  %1736 = vmatpush1.msra.mxu0 0.0
  %1737 = vmatprep.subr.mxu0 0.0
  %1738 = vmatpush1.msra.mxu0 0.0
  %1739 = vmatprep.subr.mxu0 0.0
  %1740 = vmatpush1.msra.mxu0 0.0
  %1741 = vmatprep.subr.mxu0 0.0
  %1742 = vmatpush1.msra.mxu0 0.0
  %1743 = vmatprep.subr.mxu0 0.0
  %1744 = vmatpush1.msra.mxu0 0.0
  %1745 = vmatprep.subr.mxu0 0.0
  %1746 = vmatpush1.msra.mxu0 0.0
  %1747 = vmatprep.subr.mxu0 0.0
  %1748 = vmatpush1.msra.mxu0 0.0
  %1749 = vmatprep.subr.mxu0 0.0
  %1750 = vmatpush1.msra.mxu0 0.0
  %1751 = vmatprep.subr.mxu0 0.0
  %1752 = vmatpush1.msra.mxu0 0.0
  %1753 = vmatprep.subr.mxu0 0.0
  %1754 = vmatpush1.msra.mxu0 0.0
  %1755 = vmatprep.subr.mxu0 0.0
  %1756 = vmatpush1.msra.mxu0 0.0
  %1757 = vmatprep.subr.mxu0 0.0
  %1758 = vmatpush1.msra.mxu0 0.0
  %1759 = vmatprep.subr.mxu0 0.0
  %1760 = vmatpush1.msra.mxu0 0.0
  %1761 = vmatprep.subr.mxu0 0.0
  %1762 = vmatpush1.msra.mxu0 0.0
  %1763 = vmatprep.subr.mxu0 0.0
  %1764 = vmatpush1.msra.mxu0 0.0
  %1765 = vmatprep.subr.mxu0 0.0
  %1766 = vmatpush1.msra.mxu0 0.0
  %1767 = vmatprep.subr.mxu0 0.0
  %1768 = vmatpush1.msra.mxu0 0.0
  %1769 = vmatprep.subr.mxu0 0.0
  %1770 = vmatpush1.msra.mxu0 0.0
  %1771 = vmatprep.subr.mxu0 0.0
  %1772 = vmatpush1.msra.mxu0 0.0
  %1773 = vmatprep.subr.mxu0 0.0
  %1774 = vmatpush1.msra.mxu0 0.0
  %1775 = vmatprep.subr.mxu0 0.0
  %1776 = vmatpush1.msra.mxu0 0.0
  %1777 = vmatprep.subr.mxu0 0.0
  %1778 = vmatpush1.msra.mxu0 0.0
  %1779 = vmatprep.mubr.f32.mxu0 0.0
  %v1780 = vand.u32 %v59, 4294901760
  %1781 = vmatmul.mubr.f32.gmra.mrb[0].mxu0 %v1780
  %v1782 = vpop.f32.mrb[0].mxu0
  %v1783 = vadd.f32 %v1522, %v1782
  %v1784 = vpop.f32.mrb[0].mxu0
  %1785 = vmatprep.mubr.f32.mxu0 0.0
  %v1786 = vand.u32 %v62, 4294901760
  %1787 = vmatmul.mubr.f32.gmra.mrb[0].mxu0 %v1786
  %v1788 = vpop.f32.mrb[0].mxu0
  %v1789 = vadd.f32 %v1528, %v1788
  %v1790 = vpop.f32.mrb[0].mxu0
  %1791 = vmatprep.mubr.f32.mxu0 0.0
  %v1792 = vand.u32 %v65, 4294901760
  %1793 = vmatmul.mubr.f32.gmra.mrb[0].mxu0 %v1792
  %v1794 = vpop.f32.mrb[0].mxu0
  %v1795 = vadd.f32 %v1534, %v1794
  %v1796 = vpop.f32.mrb[0].mxu0
  %1797 = vmatprep.mubr.f32.mxu0 0.0
  %v1798 = vand.u32 %v68, 4294901760
  %1799 = vmatmul.mubr.f32.gmra.mrb[0].mxu0 %v1798
  %v1800 = vpop.f32.mrb[0].mxu0
  %v1801 = vadd.f32 %v1540, %v1800
  %v1802 = vpop.f32.mrb[0].mxu0
  %1803 = vmatprep.mubr.f32.mxu0 0.0
  %v1804 = vand.u32 %v71, 4294901760
  %1805 = vmatmul.mubr.f32.gmra.mrb[0].mxu0 %v1804
  %v1806 = vpop.f32.mrb[0].mxu0
  %v1807 = vadd.f32 %v1546, %v1806
  %v1808 = vpop.f32.mrb[0].mxu0
  %1809 = vmatprep.mubr.f32.mxu0 0.0
  %v1810 = vand.u32 %v74, 4294901760
  %1811 = vmatmul.mubr.f32.gmra.mrb[0].mxu0 %v1810
  %v1812 = vpop.f32.mrb[0].mxu0
  %v1813 = vadd.f32 %v1552, %v1812
  %v1814 = vpop.f32.mrb[0].mxu0
  %1815 = vmatprep.mubr.f32.mxu0 0.0
  %v1816 = vand.u32 %v77, 4294901760
  %1817 = vmatmul.mubr.f32.gmra.mrb[0].mxu0 %v1816
  %v1818 = vpop.f32.mrb[0].mxu0
  %v1819 = vadd.f32 %v1558, %v1818
  %v1820 = vpop.f32.mrb[0].mxu0
  %1821 = vmatprep.mubr.f32.mxu0 0.0
  %v1822 = vand.u32 %v80, 4294901760
  %1823 = vmatmul.mubr.f32.gmra.mrb[0].mxu0 %v1822
  %v1824 = vpop.f32.mrb[0].mxu0
  %v1825 = vadd.f32 %v1564, %v1824
  %v1826 = vpop.f32.mrb[0].mxu0
  %1827 = vmatprep.mubr.f32.mxu0 0.0
  %v1828 = vand.u32 %v83, 4294901760
  %1829 = vmatmul.mubr.f32.gmra.mrb[0].mxu0 %v1828
  %v1830 = vpop.f32.mrb[0].mxu0
  %v1831 = vadd.f32 %v1570, %v1830
  %v1832 = vpop.f32.mrb[0].mxu0
  %1833 = vmatprep.mubr.f32.mxu0 0.0
  %v1834 = vand.u32 %v86, 4294901760
  %1835 = vmatmul.mubr.f32.gmra.mrb[0].mxu0 %v1834
  %v1836 = vpop.f32.mrb[0].mxu0
  %v1837 = vadd.f32 %v1576, %v1836
  %v1838 = vpop.f32.mrb[0].mxu0
  %1839 = vmatprep.mubr.f32.mxu0 0.0
  %v1840 = vand.u32 %v89, 4294901760
  %1841 = vmatmul.mubr.f32.gmra.mrb[0].mxu0 %v1840
  %v1842 = vpop.f32.mrb[0].mxu0
  %v1843 = vadd.f32 %v1582, %v1842
  %v1844 = vpop.f32.mrb[0].mxu0
  %1845 = vmatprep.mubr.f32.mxu0 0.0
  %v1846 = vand.u32 %v92, 4294901760
  %1847 = vmatmul.mubr.f32.gmra.mrb[0].mxu0 %v1846
  %v1848 = vpop.f32.mrb[0].mxu0
  %v1849 = vadd.f32 %v1588, %v1848
  %v1850 = vpop.f32.mrb[0].mxu0
  %1851 = vmatprep.mubr.f32.mxu0 0.0
  %v1852 = vand.u32 %v95, 4294901760
  %1853 = vmatmul.mubr.f32.gmra.mrb[0].mxu0 %v1852
  %v1854 = vpop.f32.mrb[0].mxu0
  %v1855 = vadd.f32 %v1594, %v1854
  %v1856 = vpop.f32.mrb[0].mxu0
  %1857 = vmatprep.mubr.f32.mxu0 0.0
  %v1858 = vand.u32 %v98, 4294901760
  %1859 = vmatmul.mubr.f32.gmra.mrb[0].mxu0 %v1858
  %v1860 = vpop.f32.mrb[0].mxu0
  %v1861 = vadd.f32 %v1600, %v1860
  %v1862 = vpop.f32.mrb[0].mxu0
  %1863 = vmatprep.mubr.f32.mxu0 0.0
  %v1864 = vand.u32 %v101, 4294901760
  %1865 = vmatmul.mubr.f32.gmra.mrb[0].mxu0 %v1864
  %v1866 = vpop.f32.mrb[0].mxu0
  %v1867 = vadd.f32 %v1606, %v1866
  %v1868 = vpop.f32.mrb[0].mxu0
  %1869 = vmatprep.mubr.f32.mxu0 0.0
  %v1870 = vand.u32 %v104, 4294901760
  %1871 = vmatmul.mubr.f32.gmra.mrb[0].mxu0 %v1870
  %v1872 = vpop.f32.mrb[0].mxu0
  %v1873 = vadd.f32 %v1612, %v1872
  %v1874 = vpop.f32.mrb[0].mxu0
  %1875 = vmatprep.mubr.f32.mxu0 0.0
  %v1876 = vand.u32 %v107, 4294901760
  %1877 = vmatmul.mubr.f32.gmra.mrb[0].mxu0 %v1876
  %v1878 = vpop.f32.mrb[0].mxu0
  %v1879 = vadd.f32 %v1618, %v1878
  %v1880 = vpop.f32.mrb[0].mxu0
  %1881 = vmatprep.mubr.f32.mxu0 0.0
  %v1882 = vand.u32 %v110, 4294901760
  %1883 = vmatmul.mubr.f32.gmra.mrb[0].mxu0 %v1882
  %v1884 = vpop.f32.mrb[0].mxu0
  %v1885 = vadd.f32 %v1624, %v1884
  %v1886 = vpop.f32.mrb[0].mxu0
  %1887 = vmatprep.mubr.f32.mxu0 0.0
  %v1888 = vand.u32 %v113, 4294901760
  %1889 = vmatmul.mubr.f32.gmra.mrb[0].mxu0 %v1888
  %v1890 = vpop.f32.mrb[0].mxu0
  %v1891 = vadd.f32 %v1630, %v1890
  %v1892 = vpop.f32.mrb[0].mxu0
  %1893 = vmatprep.mubr.f32.mxu0 0.0
  %v1894 = vand.u32 %v116, 4294901760
  %1895 = vmatmul.mubr.f32.gmra.mrb[0].mxu0 %v1894
  %v1896 = vpop.f32.mrb[0].mxu0
  %v1897 = vadd.f32 %v1636, %v1896
  %v1898 = vpop.f32.mrb[0].mxu0
  %1899 = vmatprep.mubr.f32.mxu0 0.0
  %v1900 = vand.u32 %v119, 4294901760
  %1901 = vmatmul.mubr.f32.gmra.mrb[0].mxu0 %v1900
  %v1902 = vpop.f32.mrb[0].mxu0
  %v1903 = vadd.f32 %v1642, %v1902
  %v1904 = vpop.f32.mrb[0].mxu0
  %1905 = vmatprep.mubr.f32.mxu0 0.0
  %v1906 = vand.u32 %v122, 4294901760
  %1907 = vmatmul.mubr.f32.gmra.mrb[0].mxu0 %v1906
  %v1908 = vpop.f32.mrb[0].mxu0
  %v1909 = vadd.f32 %v1648, %v1908
  %v1910 = vpop.f32.mrb[0].mxu0
  %1911 = vmatprep.mubr.f32.mxu0 0.0
  %v1912 = vand.u32 %v125, 4294901760
  %1913 = vmatmul.mubr.f32.gmra.mrb[0].mxu0 %v1912
  %v1914 = vpop.f32.mrb[0].mxu0
  %v1915 = vadd.f32 %v1654, %v1914
  %v1916 = vpop.f32.mrb[0].mxu0
  %1917 = vmatprep.mubr.f32.mxu0 0.0
  %v1918 = vand.u32 %v128, 4294901760
  %1919 = vmatmul.mubr.f32.gmra.mrb[0].mxu0 %v1918
  %v1920 = vpop.f32.mrb[0].mxu0
  %v1921 = vadd.f32 %v1660, %v1920
  %v1922 = vpop.f32.mrb[0].mxu0
  %1923 = vmatprep.mubr.f32.mxu0 0.0
  %v1924 = vand.u32 %v131, 4294901760
  %1925 = vmatmul.mubr.f32.gmra.mrb[0].mxu0 %v1924
  %v1926 = vpop.f32.mrb[0].mxu0
  %v1927 = vadd.f32 %v1666, %v1926
  %v1928 = vpop.f32.mrb[0].mxu0
  %1929 = vmatprep.mubr.f32.mxu0 0.0
  %v1930 = vand.u32 %v134, 4294901760
  %1931 = vmatmul.mubr.f32.gmra.mrb[0].mxu0 %v1930
  %v1932 = vpop.f32.mrb[0].mxu0
  %v1933 = vadd.f32 %v1672, %v1932
  %v1934 = vpop.f32.mrb[0].mxu0
  %1935 = vmatprep.mubr.f32.mxu0 0.0
  %v1936 = vand.u32 %v137, 4294901760
  %1937 = vmatmul.mubr.f32.gmra.mrb[0].mxu0 %v1936
  %v1938 = vpop.f32.mrb[0].mxu0
  %v1939 = vadd.f32 %v1678, %v1938
  %v1940 = vpop.f32.mrb[0].mxu0
  %1941 = vmatprep.mubr.f32.mxu0 0.0
  %v1942 = vand.u32 %v140, 4294901760
  %1943 = vmatmul.mubr.f32.gmra.mrb[0].mxu0 %v1942
  %v1944 = vpop.f32.mrb[0].mxu0
  %v1945 = vadd.f32 %v1684, %v1944
  %v1946 = vpop.f32.mrb[0].mxu0
  %1947 = vmatprep.mubr.f32.mxu0 0.0
  %v1948 = vand.u32 %v143, 4294901760
  %1949 = vmatmul.mubr.f32.gmra.mrb[0].mxu0 %v1948
  %v1950 = vpop.f32.mrb[0].mxu0
  %v1951 = vadd.f32 %v1690, %v1950
  %v1952 = vpop.f32.mrb[0].mxu0
  %1953 = vmatprep.mubr.f32.mxu0 0.0
  %v1954 = vand.u32 %v146, 4294901760
  %1955 = vmatmul.mubr.f32.gmra.mrb[0].mxu0 %v1954
  %v1956 = vpop.f32.mrb[0].mxu0
  %v1957 = vadd.f32 %v1696, %v1956
  %v1958 = vpop.f32.mrb[0].mxu0
  %1959 = vmatprep.mubr.f32.mxu0 0.0
  %v1960 = vand.u32 %v149, 4294901760
  %1961 = vmatmul.mubr.f32.gmra.mrb[0].mxu0 %v1960
  %v1962 = vpop.f32.mrb[0].mxu0
  %v1963 = vadd.f32 %v1702, %v1962
  %v1964 = vpop.f32.mrb[0].mxu0
  %1965 = vmatprep.mubr.f32.mxu0 0.0
  %v1966 = vand.u32 %v152, 4294901760
  %1967 = vmatmul.mubr.f32.gmra.mrb[0].mxu0 %v1966
  %v1968 = vpop.f32.mrb[0].mxu0
  %v1969 = vadd.f32 %v1708, %v1968
  %v1970 = vpop.f32.mrb[0].mxu0
  %1971 = vdwg.mxu0
  %vm1972 = vcmask 64512
  %1973 = vst.msk [vmem:[%s3] sm:$0xff] %vm1972, %v1783
  %1974 = vst.msk [vmem:[%s3 + $0x8] sm:$0xff] %vm1972, %v1789
  %1975 = vst.msk [vmem:[%s3 + $0x10] sm:$0xff] %vm1972, %v1795
  %1976 = vst.msk [vmem:[%s3 + $0x18] sm:$0xff] %vm1972, %v1801
  %1977 = vst.msk [vmem:[%s3 + $0x20] sm:$0xff] %vm1972, %v1807
  %1978 = vst.msk [vmem:[%s3 + $0x28] sm:$0xff] %vm1972, %v1813
  %1979 = vst.msk [vmem:[%s3 + $0x30] sm:$0xff] %vm1972, %v1819
  %1980 = vst.msk [vmem:[%s3 + $0x38] sm:$0xff] %vm1972, %v1825
  %1981 = vst.msk [vmem:[%s3 + $0x40] sm:$0xff] %vm1972, %v1831
  %1982 = vst.msk [vmem:[%s3 + $0x48] sm:$0xff] %vm1972, %v1837
  %1983 = vst.msk [vmem:[%s3 + $0x50] sm:$0xff] %vm1972, %v1843
  %1984 = vst.msk [vmem:[%s3 + $0x58] sm:$0xff] %vm1972, %v1849
  %1985 = vst.msk [vmem:[%s3 + $0x60] sm:$0xff] %vm1972, %v1855
  %1986 = vst.msk [vmem:[%s3 + $0x68] sm:$0xff] %vm1972, %v1861
  %1987 = vst.msk [vmem:[%s3 + $0x70] sm:$0xff] %vm1972, %v1867
  %1988 = vst.msk [vmem:[%s3 + $0x78] sm:$0xff] %vm1972, %v1873
  %1989 = vst.msk [vmem:[%s3 + $0x80] sm:$0xff] %vm1972, %v1879
  %1990 = vst.msk [vmem:[%s3 + $0x88] sm:$0xff] %vm1972, %v1885
  %1991 = vst.msk [vmem:[%s3 + $0x90] sm:$0xff] %vm1972, %v1891
  %1992 = vst.msk [vmem:[%s3 + $0x98] sm:$0xff] %vm1972, %v1897
  %1993 = vst.msk [vmem:[%s3 + $0xa0] sm:$0xff] %vm1972, %v1903
  %1994 = vst.msk [vmem:[%s3 + $0xa8] sm:$0xff] %vm1972, %v1909
  %1995 = vst.msk [vmem:[%s3 + $0xb0] sm:$0xff] %vm1972, %v1915
  %1996 = vst.msk [vmem:[%s3 + $0xb8] sm:$0xff] %vm1972, %v1921
  %1997 = vst.msk [vmem:[%s3 + $0xc0] sm:$0xff] %vm1972, %v1927
  %1998 = vst.msk [vmem:[%s3 + $0xc8] sm:$0xff] %vm1972, %v1933
  %1999 = vst.msk [vmem:[%s3 + $0xd0] sm:$0xff] %vm1972, %v1939
  %2000 = vst.msk [vmem:[%s3 + $0xd8] sm:$0xff] %vm1972, %v1945
  %2001 = vst.msk [vmem:[%s3 + $0xe0] sm:$0xff] %vm1972, %v1951
  %2002 = vst.msk [vmem:[%s3 + $0xe8] sm:$0xff] %vm1972, %v1957
  %2003 = vst.msk [vmem:[%s3 + $0xf0] sm:$0xff] %vm1972, %v1963
  %2004 = vst.msk [vmem:[%s3 + $0xf8] sm:$0xff] %vm1972, %v1969
  // Predicated region
  $region14: #{transition_layer_forward.3} parent=0 // pred_check
    _
  $region15: #{transition_layer_forward.3} parent=0 // pred_check_branch
    %2006 = sbr.rel (0) target = $region17
  $region16: #{transition_layer_forward.3} parent=0 // pred_region
    _
  $region17: #{transition_layer_forward.3} parent=0 // pred_fallthru
    _
  // Predicated region
  $region18: #{transition_layer_forward.3} parent=0 // pred_check
    _
  $region19: #{transition_layer_forward.3} parent=0 // pred_check_branch
    %2008 = sbr.rel (0) target = $region21
  $region20: #{transition_layer_forward.3} parent=0 // pred_region
    _
  $region21: #{transition_layer_forward.3} parent=0 // pred_fallthru
    _

</llo_original>
